<compile_context>
chip_gen: v6e
topology: v6e:2x2x1
jax: 0.10.0
libtpu: 0.0.40
codegen_flags: <defaults>
</compile_context>

<pallas_src>
import jax
import jax.numpy as jnp
from jax.experimental import pallas as pl
from jax.experimental.pallas import tpu as pltpu

INPUT_DIM = 14
H1, H2, H3 = 128, 256, 128
OUTPUT_DIM = 1


def _sfc_kernel(x_ref,
                w1_ref, b1_ref,
                w2_ref, b2_ref,
                w3_ref, b3_ref,
                w4_ref, b4_ref,
                o_ref):
    """Feature-major MLP tile: activations (features, tile_b), batch on the lane axis."""
    x = x_ref[...]                                                          # (14, tile_b) bf16

    h = jnp.dot(w1_ref[...], x, preferred_element_type=jnp.float32) + b1_ref[...]
    h = jnp.maximum(h.astype(jnp.bfloat16), 0.0)                            # (128, tile_b) bf16

    h = jnp.dot(w2_ref[...], h, preferred_element_type=jnp.float32) + b2_ref[...]
    h = jnp.maximum(h.astype(jnp.bfloat16), 0.0)                            # (256, tile_b) bf16

    h = jnp.dot(w3_ref[...], h, preferred_element_type=jnp.float32) + b3_ref[...]
    h = jnp.maximum(h.astype(jnp.bfloat16), 0.0)                            # (128, tile_b) bf16

    out = jnp.dot(w4_ref[...], h, preferred_element_type=jnp.float32) + b4_ref[...]
    # Module's default activation (F.relu) is applied to the final layer's output too.
    o_ref[...] = jnp.maximum(out, 0.0)                                      # (1, tile_b) f32


def _round_up(x, m):
    return ((x + m - 1) // m) * m


def _choose_tiling(B, max_tile=4096):
    """num_tiles = cdiv(B, max_tile); tile_b rounded up to 128 (lane-dense output).

    Bounds padding waste to < one lane group; keeps >= 2 grid steps when there is
    enough work so v7x's two TensorCores both get a slice of the 'parallel' batch axis.
    """
    num_tiles = pl.cdiv(B, max_tile)
    if num_tiles == 1 and B > 256:
        num_tiles = 2
    tile_b = _round_up(pl.cdiv(B, num_tiles), 128)
    return tile_b, num_tiles


def sfc_forward(x, params, tile_b=None):
    """x: (B, 14) float32. Returns torch.squeeze-equivalent output: (B,) for B>1, scalar for B==1."""
    B = x.shape[0]
    (w1, b1), (w2, b2), (w3, b3), (w4, b4) = params

    if tile_b is None:
        tile_b, num_tiles = _choose_tiling(B)
    else:
        assert tile_b % 128 == 0, "tile_b must be a multiple of 128 (lane-dense output)"
        num_tiles = pl.cdiv(B, tile_b)
    B_pad = num_tiles * tile_b

    # Pre-cast input to bf16 (halves the input DMA), pad the batch, go feature-major:
    # (14, B_pad) with the batch on the lane axis.
    xb = x.astype(jnp.bfloat16)
    if B_pad != B:
        xb = jnp.pad(xb, ((0, B_pad - B), (0, 0)))
    x_t = xb.T                                                      # (14, B_pad) bf16

    # PyTorch nn.Linear layout (out_features, in_features) is exactly the feature-major
    # weight layout we need — no transpose required, just a bf16 cast.
    w1b = w1.astype(jnp.bfloat16)                                   # (128, 14)
    w2b = w2.astype(jnp.bfloat16)                                   # (256, 128)
    w3b = w3.astype(jnp.bfloat16)                                   # (128, 256)
    w4b = w4.astype(jnp.bfloat16)                                   # (1, 128)
    b1c = b1.reshape(H1, 1).astype(jnp.float32)
    b2c = b2.reshape(H2, 1).astype(jnp.float32)
    b3c = b3.reshape(H3, 1).astype(jnp.float32)
    b4c = b4.reshape(OUTPUT_DIM, 1).astype(jnp.float32)

    x_map = lambda i: (0, i)
    const_map = lambda i: (0, 0)

    flops = 2 * B_pad * (INPUT_DIM * H1 + H1 * H2 + H2 * H3 + H3 * OUTPUT_DIM)
    weight_bytes = 2 * (w1b.size + w2b.size + w3b.size + w4b.size) + \
                   4 * (b1c.size + b2c.size + b3c.size + b4c.size)
    bytes_accessed = 2 * B_pad * INPUT_DIM + 4 * B_pad * OUTPUT_DIM + weight_bytes

    out = pl.pallas_call(
        _sfc_kernel,
        out_shape=jax.ShapeDtypeStruct((OUTPUT_DIM, B_pad), jnp.float32),
        grid_spec=pltpu.PrefetchScalarGridSpec(
            num_scalar_prefetch=0,
            grid=(num_tiles,),
            in_specs=[
                pl.BlockSpec((INPUT_DIM, tile_b), x_map),      # x tile, feature-major
                pl.BlockSpec((H1, INPUT_DIM), const_map),      # w1 (VMEM-resident)
                pl.BlockSpec((H1, 1), const_map),              # b1
                pl.BlockSpec((H2, H1), const_map),             # w2
                pl.BlockSpec((H2, 1), const_map),              # b2
                pl.BlockSpec((H3, H2), const_map),             # w3
                pl.BlockSpec((H3, 1), const_map),              # b3
                pl.BlockSpec((OUTPUT_DIM, H3), const_map),     # w4
                pl.BlockSpec((OUTPUT_DIM, 1), const_map),      # b4
            ],
            out_specs=pl.BlockSpec((OUTPUT_DIM, tile_b), x_map),   # lane-dense output
        ),
        compiler_params=pltpu.CompilerParams(
            dimension_semantics=("parallel",),
            vmem_limit_bytes=32 * 1024 * 1024,
        ),
        cost_estimate=pl.CostEstimate(
            flops=flops, transcendentals=0, bytes_accessed=bytes_accessed),
    )(x_t, w1b, b1c, w2b, b2c, w3b, b3c, w4b, b4c)

    out = out[0, :B]            # (B,)
    # torch.squeeze removes all size-1 dims: (B, 1) -> (B,), scalar if B == 1.
    return jnp.squeeze(out)


def init_params(key):
    """PyTorch nn.Linear default init U(-1/sqrt(fan_in), +1/sqrt(fan_in)), PyTorch layout:
    weight (out_features, in_features), bias (out_features,)."""
    dims = [(INPUT_DIM, H1), (H1, H2), (H2, H3), (H3, OUTPUT_DIM)]
    params = []
    for fan_in, fan_out in dims:
        key, kw, kb = jax.random.split(key, 3)
        bound = 1.0 / (fan_in ** 0.5)
        w = jax.random.uniform(kw, (fan_out, fan_in), jnp.float32, -bound, bound)
        b = jax.random.uniform(kb, (fan_out,), jnp.float32, -bound, bound)
        params.append((w, b))
    return params


def reference_forward(x, params):
    """Pure-JAX reference mirroring the kernel's dtype strategy (bf16 matmuls, f32 accumulate,
    f32 bias add, bf16 ReLU).  bf16 operands are a deliberate precision tradeoff vs f32 PyTorch."""
    (w1, b1), (w2, b2), (w3, b3), (w4, b4) = params
    h = x.astype(jnp.bfloat16)
    h = jnp.dot(h, w1.T.astype(jnp.bfloat16), preferred_element_type=jnp.float32) + b1
    h = jnp.maximum(h.astype(jnp.bfloat16), 0.0)
    h = jnp.dot(h, w2.T.astype(jnp.bfloat16), preferred_element_type=jnp.float32) + b2
    h = jnp.maximum(h.astype(jnp.bfloat16), 0.0)
    h = jnp.dot(h, w3.T.astype(jnp.bfloat16), preferred_element_type=jnp.float32) + b3
    h = jnp.maximum(h.astype(jnp.bfloat16), 0.0)
    out = jnp.dot(h, w4.T.astype(jnp.bfloat16), preferred_element_type=jnp.float32) + b4
    out = jnp.maximum(out, 0.0)
    return jnp.squeeze(out)


if __name__ == "__main__":
    key = jax.random.PRNGKey(0)
    key, kx1, kx2 = jax.random.split(key, 3)
    params = init_params(key)

    # Multi-tile path: B=300 with tile_b=128 exercises a 3-step grid plus batch padding.
    B = 300
    x = jax.random.normal(kx1, (B, INPUT_DIM), jnp.float32)
    y = jax.block_until_ready(sfc_forward(x, params, tile_b=128))
    y_ref = reference_forward(x, params)
    assert y.shape == (B,), f"unexpected output shape {y.shape}"
    assert jnp.allclose(y, y_ref, atol=5e-3, rtol=5e-3), \
        f"mismatch vs reference: max abs err {jnp.max(jnp.abs(y - y_ref))}"

    # Single-row path: torch.squeeze semantics give a scalar for B == 1.
    x1 = jax.random.normal(kx2, (1, INPUT_DIM), jnp.float32)
    y1 = jax.block_until_ready(sfc_forward(x1, params))
    y1_ref = reference_forward(x1, params)
    assert y1.shape == (), f"unexpected output shape {y1.shape}"
    assert jnp.allclose(y1, y1_ref, atol=5e-3, rtol=5e-3), \
        f"mismatch (B=1): {y1} vs {y1_ref}"

    print("KERNEL_OK")
</pallas_src>

<mosaic_0001>
module attributes {stable_mosaic.version = 11 : i64} {
  func.func @_sfc_kernel(%arg0: i32, %arg1: memref<14x128xbf16, #tpu.memory_space<vmem>>, %arg2: memref<128x14xbf16, #tpu.memory_space<vmem>>, %arg3: memref<128x1xf32, #tpu.memory_space<vmem>>, %arg4: memref<256x128xbf16, #tpu.memory_space<vmem>>, %arg5: memref<256x1xf32, #tpu.memory_space<vmem>>, %arg6: memref<128x256xbf16, #tpu.memory_space<vmem>>, %arg7: memref<128x1xf32, #tpu.memory_space<vmem>>, %arg8: memref<1x128xbf16, #tpu.memory_space<vmem>>, %arg9: memref<1x1xf32, #tpu.memory_space<vmem>>, %arg10: memref<1x128xf32, #tpu.memory_space<vmem>>) attributes {dimension_semantics = [#tpu.dimension_semantics<parallel>], iteration_bounds = array<i64: 3>, scalar_prefetch = 0 : i64, scratch_operands = 0 : i64, tpu.core_type = #tpu.core_type<tc>, window_params = [{transform_indices = @transform_0, window_bounds = array<i64: 14, 128>}, {pipeline_mode = #tpu.pipeline_mode<synchronous>, transform_indices = @transform_1, window_bounds = array<i64: 128, 14>}, {pipeline_mode = #tpu.pipeline_mode<synchronous>, transform_indices = @transform_2, window_bounds = array<i64: 128, 1>}, {pipeline_mode = #tpu.pipeline_mode<synchronous>, transform_indices = @transform_3, window_bounds = array<i64: 256, 128>}, {pipeline_mode = #tpu.pipeline_mode<synchronous>, transform_indices = @transform_4, window_bounds = array<i64: 256, 1>}, {pipeline_mode = #tpu.pipeline_mode<synchronous>, transform_indices = @transform_5, window_bounds = array<i64: 128, 256>}, {pipeline_mode = #tpu.pipeline_mode<synchronous>, transform_indices = @transform_6, window_bounds = array<i64: 128, 1>}, {pipeline_mode = #tpu.pipeline_mode<synchronous>, transform_indices = @transform_7, window_bounds = array<i64: 1, 128>}, {pipeline_mode = #tpu.pipeline_mode<synchronous>, transform_indices = @transform_8, window_bounds = array<i64: 1, 1>}, {transform_indices = @transform_9, window_bounds = array<i64: 1, 128>}]} {
    %c0 = arith.constant 0 : index
    %c0_0 = arith.constant 0 : index
    %0 = vector.load %arg1[%c0, %c0_0] : memref<14x128xbf16, #tpu.memory_space<vmem>>, vector<14x128xbf16>
    %c0_1 = arith.constant 0 : index
    %c0_2 = arith.constant 0 : index
    %1 = vector.load %arg2[%c0_1, %c0_2] : memref<128x14xbf16, #tpu.memory_space<vmem>>, vector<128x14xbf16>
    %cst = arith.constant dense<0.000000e+00> : vector<128x128xf32>
    %2 = tpu.matmul %1, %0, %cst {dimension_numbers = #tpu.dot_dimension_numbers<[1], [0], [0], [1], [0, 0, 1, 1], [], []>} : vector<128x14xbf16>, vector<14x128xbf16>, vector<128x128xf32> -> vector<128x128xf32>
    %c0_3 = arith.constant 0 : index
    %c0_4 = arith.constant 0 : index
    %3 = vector.load %arg3[%c0_3, %c0_4] : memref<128x1xf32, #tpu.memory_space<vmem>>, vector<128x1xf32>
    %4 = vector.broadcast %3 : vector<128x1xf32> to vector<128x128xf32>
    %5 = arith.addf %2, %4 : vector<128x128xf32>
    %6 = arith.truncf %5 : vector<128x128xf32> to vector<128x128xbf16>
    %cst_5 = arith.constant 0.000000e+00 : bf16
    %7 = vector.broadcast %cst_5 : bf16 to vector<128x128xbf16>
    %8 = arith.maximumf %6, %7 : vector<128x128xbf16>
    %c0_6 = arith.constant 0 : index
    %c0_7 = arith.constant 0 : index
    %9 = vector.load %arg4[%c0_6, %c0_7] : memref<256x128xbf16, #tpu.memory_space<vmem>>, vector<256x128xbf16>
    %cst_8 = arith.constant dense<0.000000e+00> : vector<256x128xf32>
    %10 = tpu.matmul %9, %8, %cst_8 {dimension_numbers = #tpu.dot_dimension_numbers<[1], [0], [0], [1], [0, 0, 1, 1], [], []>} : vector<256x128xbf16>, vector<128x128xbf16>, vector<256x128xf32> -> vector<256x128xf32>
    %c0_9 = arith.constant 0 : index
    %c0_10 = arith.constant 0 : index
    %11 = vector.load %arg5[%c0_9, %c0_10] : memref<256x1xf32, #tpu.memory_space<vmem>>, vector<256x1xf32>
    %12 = vector.broadcast %11 : vector<256x1xf32> to vector<256x128xf32>
    %13 = arith.addf %10, %12 : vector<256x128xf32>
    %14 = arith.truncf %13 : vector<256x128xf32> to vector<256x128xbf16>
    %cst_11 = arith.constant 0.000000e+00 : bf16
    %15 = vector.broadcast %cst_11 : bf16 to vector<256x128xbf16>
    %16 = arith.maximumf %14, %15 : vector<256x128xbf16>
    %c0_12 = arith.constant 0 : index
    %c0_13 = arith.constant 0 : index
    %17 = vector.load %arg6[%c0_12, %c0_13] : memref<128x256xbf16, #tpu.memory_space<vmem>>, vector<128x256xbf16>
    %cst_14 = arith.constant dense<0.000000e+00> : vector<128x128xf32>
    %18 = tpu.matmul %17, %16, %cst_14 {dimension_numbers = #tpu.dot_dimension_numbers<[1], [0], [0], [1], [0, 0, 1, 1], [], []>} : vector<128x256xbf16>, vector<256x128xbf16>, vector<128x128xf32> -> vector<128x128xf32>
    %c0_15 = arith.constant 0 : index
    %c0_16 = arith.constant 0 : index
    %19 = vector.load %arg7[%c0_15, %c0_16] : memref<128x1xf32, #tpu.memory_space<vmem>>, vector<128x1xf32>
    %20 = vector.broadcast %19 : vector<128x1xf32> to vector<128x128xf32>
    %21 = arith.addf %18, %20 : vector<128x128xf32>
    %22 = arith.truncf %21 : vector<128x128xf32> to vector<128x128xbf16>
    %cst_17 = arith.constant 0.000000e+00 : bf16
    %23 = vector.broadcast %cst_17 : bf16 to vector<128x128xbf16>
    %24 = arith.maximumf %22, %23 : vector<128x128xbf16>
    %c0_18 = arith.constant 0 : index
    %c0_19 = arith.constant 0 : index
    %25 = vector.load %arg8[%c0_18, %c0_19] : memref<1x128xbf16, #tpu.memory_space<vmem>>, vector<1x128xbf16>
    %cst_20 = arith.constant dense<0.000000e+00> : vector<1x128xf32>
    %26 = tpu.matmul %25, %24, %cst_20 {dimension_numbers = #tpu.dot_dimension_numbers<[1], [0], [0], [1], [0, 0, 1, 1], [], []>} : vector<1x128xbf16>, vector<128x128xbf16>, vector<1x128xf32> -> vector<1x128xf32>
    %c0_21 = arith.constant 0 : index
    %c0_22 = arith.constant 0 : index
    %27 = vector.load %arg9[%c0_21, %c0_22] : memref<1x1xf32, #tpu.memory_space<vmem>>, vector<1x1xf32>
    %28 = vector.broadcast %27 : vector<1x1xf32> to vector<1x128xf32>
    %29 = arith.addf %26, %28 : vector<1x128xf32>
    %cst_23 = arith.constant 0.000000e+00 : f32
    %30 = vector.broadcast %cst_23 : f32 to vector<1x128xf32>
    %31 = arith.maximumf %29, %30 : vector<1x128xf32>
    %c0_24 = arith.constant 0 : index
    %c0_25 = arith.constant 0 : index
    %32 = vector.load %arg10[%c0_24, %c0_25] : memref<1x128xf32, #tpu.memory_space<vmem>>, vector<1x128xf32>
    tpu.vector_store %arg10[%c0_24, %c0_25], %31 {strides = array<i32>} : memref<1x128xf32, #tpu.memory_space<vmem>>, vector<1x128xf32>,
    return
  }
  func.func @transform_0(%arg0: i32) -> (i32, i32) {
    %c0_i32 = arith.constant 0 : i32
    %c0_i32_0 = arith.constant 0 : i32
    return %c0_i32, %arg0 : i32, i32
  }
  func.func @transform_1(%arg0: i32) -> (i32, i32) {
    %c0_i32 = arith.constant 0 : i32
    %c0_i32_0 = arith.constant 0 : i32
    %c0_i32_1 = arith.constant 0 : i32
    return %c0_i32, %c0_i32_0 : i32, i32
  }
  func.func @transform_2(%arg0: i32) -> (i32, i32) {
    %c0_i32 = arith.constant 0 : i32
    %c0_i32_0 = arith.constant 0 : i32
    %c0_i32_1 = arith.constant 0 : i32
    return %c0_i32, %c0_i32_0 : i32, i32
  }
  func.func @transform_3(%arg0: i32) -> (i32, i32) {
    %c0_i32 = arith.constant 0 : i32
    %c0_i32_0 = arith.constant 0 : i32
    %c0_i32_1 = arith.constant 0 : i32
    return %c0_i32, %c0_i32_0 : i32, i32
  }
  func.func @transform_4(%arg0: i32) -> (i32, i32) {
    %c0_i32 = arith.constant 0 : i32
    %c0_i32_0 = arith.constant 0 : i32
    %c0_i32_1 = arith.constant 0 : i32
    return %c0_i32, %c0_i32_0 : i32, i32
  }
  func.func @transform_5(%arg0: i32) -> (i32, i32) {
    %c0_i32 = arith.constant 0 : i32
    %c0_i32_0 = arith.constant 0 : i32
    %c0_i32_1 = arith.constant 0 : i32
    return %c0_i32, %c0_i32_0 : i32, i32
  }
  func.func @transform_6(%arg0: i32) -> (i32, i32) {
    %c0_i32 = arith.constant 0 : i32
    %c0_i32_0 = arith.constant 0 : i32
    %c0_i32_1 = arith.constant 0 : i32
    return %c0_i32, %c0_i32_0 : i32, i32
  }
  func.func @transform_7(%arg0: i32) -> (i32, i32) {
    %c0_i32 = arith.constant 0 : i32
    %c0_i32_0 = arith.constant 0 : i32
    %c0_i32_1 = arith.constant 0 : i32
    return %c0_i32, %c0_i32_0 : i32, i32
  }
  func.func @transform_8(%arg0: i32) -> (i32, i32) {
    %c0_i32 = arith.constant 0 : i32
    %c0_i32_0 = arith.constant 0 : i32
    %c0_i32_1 = arith.constant 0 : i32
    return %c0_i32, %c0_i32_0 : i32, i32
  }
  func.func @transform_9(%arg0: i32) -> (i32, i32) {
    %c0_i32 = arith.constant 0 : i32
    %c0_i32_0 = arith.constant 0 : i32
    return %c0_i32, %arg0 : i32, i32
  }
}

</mosaic_0001>

<llo_original>
// kernel: tpu_custom_call.1
$region0: #{tpu_custom_call.1}
  #allocation0 [shape = 'u32[]', space=smem, size = 0x4, offset = 0x4, fixed_abs, tag = 'smem constant byte address 0x4 - core index']
  #allocation1 [shape = 'u32[144,128]{1,0:T(1,128)}', space=vmem, size = 0x12000, scoped, tag = 'internal scratch']
  #allocation2 [shape = 'f32[1,1]{1,0:T(1,128)S(1)}', space=vmem, size = 0x200, scoped, tag = 'scoped memory for tpu_custom_call.1']
  %s0 = inlined_call_operand.vmem [shape: bf16[14,384], index: 0, kind: input, shape index: {}]
  %s1 = inlined_call_operand.vmem [shape: bf16[128,14], index: 1, kind: input, shape index: {}]
  %s2 = inlined_call_operand.vmem [shape: f32[128,1], index: 2, kind: input, shape index: {}]
  %s3 = inlined_call_operand.vmem [shape: bf16[256,128], index: 3, kind: input, shape index: {}]
  %s4 = inlined_call_operand.vmem [shape: f32[256,1], index: 4, kind: input, shape index: {}]
  %s5 = inlined_call_operand.vmem [shape: bf16[128,256], index: 5, kind: input, shape index: {}]
  %s6 = inlined_call_operand.vmem [shape: f32[128,1], index: 6, kind: input, shape index: {}]
  %s7 = inlined_call_operand.vmem [shape: bf16[1,128], index: 7, kind: input, shape index: {}]
  %s8 = inlined_call_operand.<no memory space> [shape: f32[1,1], index: 8, kind: input, shape index: {}]
  %s9 = inlined_call_operand.hbm [shape: f32[1,384], index: 9, kind: output, shape index: {}]
  %s10 = sld [smem:[#allocation0]]
  $region110: #{tpu_custom_call.1} parent=0
    _
  %s12 = ssub.s32 1, %s10
  %s13 = scalar_select 0, %s12, %s10
  %v14 = vstv %s8
  %15 = vst [vmem:[#allocation2] sm:$0x1] %v14
  $region1: #{tpu_custom_call.1} parent=0
    #allocation3 [shape = 'u8[8192]{0}', space=vmem, size = 0x2000, scoped, tag = 'input window, operand 0']
    #allocation4 [shape = 'u8[1024]{0}', space=vmem, size = 0x400, scoped, tag = 'output window, operand 0']
    #allocation5 [shape = 's32[2]{0}', space=sflag, size = 0x8, scoped, tag = 'scoped memory for tpu_custom_call.1']
    %16 = vsyncpa [#allocation5], 0
    %s17 = scalar_lea.sflag [#allocation5], 1
    %18 = vsyncpa %s17, 0
    loop: start=0, step=1, limit=5
    $region2: #{tpu_custom_call.1} parent=1 // loop_pre_header
      _
    $region3: #{tpu_custom_call.1} parent=1 // loop_header
      %s20 = sphi 0, %s24
      %p21 = scmp.ge.s32.totalorder %s20, 5
      %s30 = sphi 0, %s32
      %s33 = sphi 0, %s30
      %s34 = sphi 0, %s33
      %s50 = sphi 0, %s34
      %s54 = sphi 0, %s54
      %s56 = sphi 0, %s54
      %s57 = sphi 0, %s56
      %s71 = sphi 0, %s57
      %s75 = sphi 0, %s75
      %s77 = sphi 0, %s75
      %s78 = sphi 0, %s77
      %s92 = sphi 0, %s78
      %s96 = sphi 0, %s96
      %s98 = sphi 0, %s96
      %s99 = sphi 0, %s98
      %s113 = sphi 0, %s99
      %s117 = sphi 0, %s117
      %s119 = sphi 0, %s117
      %s120 = sphi 0, %s119
      %s134 = sphi 0, %s120
      %s138 = sphi 0, %s138
      %s140 = sphi 0, %s138
      %s141 = sphi 0, %s140
      %s155 = sphi 0, %s141
      %s159 = sphi 0, %s159
      %s161 = sphi 0, %s159
      %s162 = sphi 0, %s161
      %s176 = sphi 0, %s162
      %s180 = sphi 0, %s180
      %s182 = sphi 0, %s180
      %s183 = sphi 0, %s182
      %s197 = sphi 0, %s183
      %s201 = sphi 0, %s201
      %s203 = sphi 0, %s201
      %s204 = sphi 0, %s203
      %s218 = sphi 0, %s204
      %s224 = sphi 0, %s226
      %s227 = sphi 0, %s224
      %s228 = sphi 0, %s227
      %s244 = sphi 0, %s228
    $region4: #{tpu_custom_call.1} parent=1 // loop_header_branch
      %23 = sbr.rel (%p21) target = $region8
    $region5: #{tpu_custom_call.1} parent=1 // loop_body
      %s25 = ssub.s32 %s20, 1
      %s26 = ssub.s32 %s20, 2
      %s27 = sadd.s32 %s20, 1
      %s28 = ssub.s32 %s20, %s27
      %p29 = scmp.eq.s32.totalorder %s28, 0
      %s31 = sadd.s32 %s30, 1
      %s32 = scalar_select %p29, %s30, %s31
      %p35 = pneg %p29
      %p36 = scmp.eq.s32.totalorder %s20, 2
      %p37 = por %p35, %p36
      %p38 = scmp.ne.s32.totalorder %s30, %s33
      %p39 = scmp.eq.s32.totalorder %s20, 0
      %p40 = por %p38, %p39
      %p41 = scmp.ne.s32.totalorder %s30, %s33
      %p42 = scmp.eq.s32.totalorder %s25, 2
      %p43 = por %p41, %p42
      %p44 = scmp.ne.s32.totalorder %s33, %s34
      %p45 = scmp.eq.s32.totalorder %s25, 0
      %p46 = por %p44, %p45
      %p47 = scmp.ne.s32.totalorder %s33, %s34
      %p48 = scmp.eq.s32.totalorder %s26, 2
      %p49 = por %p47, %p48
      %p51 = scmp.ne.s32.totalorder %s34, %s50
      %p52 = scmp.eq.s32.totalorder %s26, 0
      %p53 = por %p51, %p52
      %s55 = sadd.s32 %s54, 1
      %p58 = scmp.eq.s32.totalorder %s20, 2
      %p59 = scmp.ne.s32.totalorder %s54, %s56
      %p60 = scmp.eq.s32.totalorder %s20, 0
      %p61 = por %p59, %p60
      %p62 = scmp.ne.s32.totalorder %s54, %s56
      %p63 = scmp.eq.s32.totalorder %s25, 2
      %p64 = por %p62, %p63
      %p65 = scmp.ne.s32.totalorder %s56, %s57
      %p66 = scmp.eq.s32.totalorder %s25, 0
      %p67 = por %p65, %p66
      %p68 = scmp.ne.s32.totalorder %s56, %s57
      %p69 = scmp.eq.s32.totalorder %s26, 2
      %p70 = por %p68, %p69
      %p72 = scmp.ne.s32.totalorder %s57, %s71
      %p73 = scmp.eq.s32.totalorder %s26, 0
      %p74 = por %p72, %p73
      %s76 = sadd.s32 %s75, 1
      %p79 = scmp.eq.s32.totalorder %s20, 2
      %p80 = scmp.ne.s32.totalorder %s75, %s77
      %p81 = scmp.eq.s32.totalorder %s20, 0
      %p82 = por %p80, %p81
      %p83 = scmp.ne.s32.totalorder %s75, %s77
      %p84 = scmp.eq.s32.totalorder %s25, 2
      %p85 = por %p83, %p84
      %p86 = scmp.ne.s32.totalorder %s77, %s78
      %p87 = scmp.eq.s32.totalorder %s25, 0
      %p88 = por %p86, %p87
      %p89 = scmp.ne.s32.totalorder %s77, %s78
      %p90 = scmp.eq.s32.totalorder %s26, 2
      %p91 = por %p89, %p90
      %p93 = scmp.ne.s32.totalorder %s78, %s92
      %p94 = scmp.eq.s32.totalorder %s26, 0
      %p95 = por %p93, %p94
      %s97 = sadd.s32 %s96, 1
      %p100 = scmp.eq.s32.totalorder %s20, 2
      %p101 = scmp.ne.s32.totalorder %s96, %s98
      %p102 = scmp.eq.s32.totalorder %s20, 0
      %p103 = por %p101, %p102
      %p104 = scmp.ne.s32.totalorder %s96, %s98
      %p105 = scmp.eq.s32.totalorder %s25, 2
      %p106 = por %p104, %p105
      %p107 = scmp.ne.s32.totalorder %s98, %s99
      %p108 = scmp.eq.s32.totalorder %s25, 0
      %p109 = por %p107, %p108
      %p110 = scmp.ne.s32.totalorder %s98, %s99
      %p111 = scmp.eq.s32.totalorder %s26, 2
      %p112 = por %p110, %p111
      %p114 = scmp.ne.s32.totalorder %s99, %s113
      %p115 = scmp.eq.s32.totalorder %s26, 0
      %p116 = por %p114, %p115
      %s118 = sadd.s32 %s117, 1
      %p121 = scmp.eq.s32.totalorder %s20, 2
      %p122 = scmp.ne.s32.totalorder %s117, %s119
      %p123 = scmp.eq.s32.totalorder %s20, 0
      %p124 = por %p122, %p123
      %p125 = scmp.ne.s32.totalorder %s117, %s119
      %p126 = scmp.eq.s32.totalorder %s25, 2
      %p127 = por %p125, %p126
      %p128 = scmp.ne.s32.totalorder %s119, %s120
      %p129 = scmp.eq.s32.totalorder %s25, 0
      %p130 = por %p128, %p129
      %p131 = scmp.ne.s32.totalorder %s119, %s120
      %p132 = scmp.eq.s32.totalorder %s26, 2
      %p133 = por %p131, %p132
      %p135 = scmp.ne.s32.totalorder %s120, %s134
      %p136 = scmp.eq.s32.totalorder %s26, 0
      %p137 = por %p135, %p136
      %s139 = sadd.s32 %s138, 1
      %p142 = scmp.eq.s32.totalorder %s20, 2
      %p143 = scmp.ne.s32.totalorder %s138, %s140
      %p144 = scmp.eq.s32.totalorder %s20, 0
      %p145 = por %p143, %p144
      %p146 = scmp.ne.s32.totalorder %s138, %s140
      %p147 = scmp.eq.s32.totalorder %s25, 2
      %p148 = por %p146, %p147
      %p149 = scmp.ne.s32.totalorder %s140, %s141
      %p150 = scmp.eq.s32.totalorder %s25, 0
      %p151 = por %p149, %p150
      %p152 = scmp.ne.s32.totalorder %s140, %s141
      %p153 = scmp.eq.s32.totalorder %s26, 2
      %p154 = por %p152, %p153
      %p156 = scmp.ne.s32.totalorder %s141, %s155
      %p157 = scmp.eq.s32.totalorder %s26, 0
      %p158 = por %p156, %p157
      %s160 = sadd.s32 %s159, 1
      %p163 = scmp.eq.s32.totalorder %s20, 2
      %p164 = scmp.ne.s32.totalorder %s159, %s161
      %p165 = scmp.eq.s32.totalorder %s20, 0
      %p166 = por %p164, %p165
      %p167 = scmp.ne.s32.totalorder %s159, %s161
      %p168 = scmp.eq.s32.totalorder %s25, 2
      %p169 = por %p167, %p168
      %p170 = scmp.ne.s32.totalorder %s161, %s162
      %p171 = scmp.eq.s32.totalorder %s25, 0
      %p172 = por %p170, %p171
      %p173 = scmp.ne.s32.totalorder %s161, %s162
      %p174 = scmp.eq.s32.totalorder %s26, 2
      %p175 = por %p173, %p174
      %p177 = scmp.ne.s32.totalorder %s162, %s176
      %p178 = scmp.eq.s32.totalorder %s26, 0
      %p179 = por %p177, %p178
      %s181 = sadd.s32 %s180, 1
      %p184 = scmp.eq.s32.totalorder %s20, 2
      %p185 = scmp.ne.s32.totalorder %s180, %s182
      %p186 = scmp.eq.s32.totalorder %s20, 0
      %p187 = por %p185, %p186
      %p188 = scmp.ne.s32.totalorder %s180, %s182
      %p189 = scmp.eq.s32.totalorder %s25, 2
      %p190 = por %p188, %p189
      %p191 = scmp.ne.s32.totalorder %s182, %s183
      %p192 = scmp.eq.s32.totalorder %s25, 0
      %p193 = por %p191, %p192
      %p194 = scmp.ne.s32.totalorder %s182, %s183
      %p195 = scmp.eq.s32.totalorder %s26, 2
      %p196 = por %p194, %p195
      %p198 = scmp.ne.s32.totalorder %s183, %s197
      %p199 = scmp.eq.s32.totalorder %s26, 0
      %p200 = por %p198, %p199
      %s202 = sadd.s32 %s201, 1
      %p205 = scmp.eq.s32.totalorder %s20, 2
      %p206 = scmp.ne.s32.totalorder %s201, %s203
      %p207 = scmp.eq.s32.totalorder %s20, 0
      %p208 = por %p206, %p207
      %p209 = scmp.ne.s32.totalorder %s201, %s203
      %p210 = scmp.eq.s32.totalorder %s25, 2
      %p211 = por %p209, %p210
      %p212 = scmp.ne.s32.totalorder %s203, %s204
      %p213 = scmp.eq.s32.totalorder %s25, 0
      %p214 = por %p212, %p213
      %p215 = scmp.ne.s32.totalorder %s203, %s204
      %p216 = scmp.eq.s32.totalorder %s26, 2
      %p217 = por %p215, %p216
      %p219 = scmp.ne.s32.totalorder %s204, %s218
      %p220 = scmp.eq.s32.totalorder %s26, 0
      %p221 = por %p219, %p220
      %s222 = ssub.s32 %s20, %s27
      %p223 = scmp.eq.s32.totalorder %s222, 0
      %s225 = sadd.s32 %s224, 1
      %s226 = scalar_select %p223, %s224, %s225
      %p229 = pneg %p223
      %p230 = scmp.eq.s32.totalorder %s20, 2
      %p231 = por %p229, %p230
      %p232 = scmp.ne.s32.totalorder %s224, %s227
      %p233 = scmp.eq.s32.totalorder %s20, 0
      %p234 = por %p232, %p233
      %p235 = scmp.ne.s32.totalorder %s224, %s227
      %p236 = scmp.eq.s32.totalorder %s25, 2
      %p237 = por %p235, %p236
      %p238 = scmp.ne.s32.totalorder %s227, %s228
      %p239 = scmp.eq.s32.totalorder %s25, 0
      %p240 = por %p238, %p239
      %p241 = scmp.ne.s32.totalorder %s227, %s228
      %p242 = scmp.eq.s32.totalorder %s26, 2
      %p243 = por %p241, %p242
      %p245 = scmp.ne.s32.totalorder %s228, %s244
      %p246 = scmp.eq.s32.totalorder %s26, 0
      %p247 = por %p245, %p246
      %p248 = scmp.le.s32.totalorder 1, %s20
      %p249 = scmp.lt.s32.totalorder %s20, 4
      %p250 = pnand %p248, %p249
      %p251 = pneg %p250
      // Predicated region
      $region9: #{tpu_custom_call.1} parent=5 // pred_check
        _
      $region10: #{tpu_custom_call.1} parent=5 // pred_check_branch
        %253 = sbr.rel (%p250) target = $region12
      $region11: #{tpu_custom_call.1} parent=5 // pred_region
        %s254 = ssub.s32 %s20, 1
        // Predicated region
        $region13: #{tpu_custom_call.1} parent=11 // pred_check
          %p255 = pneg %p67
        $region14: #{tpu_custom_call.1} parent=11 // pred_check_branch
          %257 = sbr.rel (%p255) target = $region16
        $region15: #{tpu_custom_call.1} parent=11 // pred_region
          _
        $region16: #{tpu_custom_call.1} parent=11 // pred_fallthru
          _
        // Predicated region
        $region17: #{tpu_custom_call.1} parent=11 // pred_check
          %p258 = pneg %p88
        $region18: #{tpu_custom_call.1} parent=11 // pred_check_branch
          %260 = sbr.rel (%p258) target = $region20
        $region19: #{tpu_custom_call.1} parent=11 // pred_region
          _
        $region20: #{tpu_custom_call.1} parent=11 // pred_fallthru
          _
        // Predicated region
        $region21: #{tpu_custom_call.1} parent=11 // pred_check
          %p261 = pneg %p109
        $region22: #{tpu_custom_call.1} parent=11 // pred_check_branch
          %263 = sbr.rel (%p261) target = $region24
        $region23: #{tpu_custom_call.1} parent=11 // pred_region
          _
        $region24: #{tpu_custom_call.1} parent=11 // pred_fallthru
          _
        // Predicated region
        $region25: #{tpu_custom_call.1} parent=11 // pred_check
          %p264 = pneg %p130
        $region26: #{tpu_custom_call.1} parent=11 // pred_check_branch
          %266 = sbr.rel (%p264) target = $region28
        $region27: #{tpu_custom_call.1} parent=11 // pred_region
          _
        $region28: #{tpu_custom_call.1} parent=11 // pred_fallthru
          _
        // Predicated region
        $region29: #{tpu_custom_call.1} parent=11 // pred_check
          %p267 = pneg %p151
        $region30: #{tpu_custom_call.1} parent=11 // pred_check_branch
          %269 = sbr.rel (%p267) target = $region32
        $region31: #{tpu_custom_call.1} parent=11 // pred_region
          _
        $region32: #{tpu_custom_call.1} parent=11 // pred_fallthru
          _
        // Predicated region
        $region33: #{tpu_custom_call.1} parent=11 // pred_check
          %p270 = pneg %p172
        $region34: #{tpu_custom_call.1} parent=11 // pred_check_branch
          %272 = sbr.rel (%p270) target = $region36
        $region35: #{tpu_custom_call.1} parent=11 // pred_region
          _
        $region36: #{tpu_custom_call.1} parent=11 // pred_fallthru
          _
        // Predicated region
        $region37: #{tpu_custom_call.1} parent=11 // pred_check
          %p273 = pneg %p193
        $region38: #{tpu_custom_call.1} parent=11 // pred_check_branch
          %275 = sbr.rel (%p273) target = $region40
        $region39: #{tpu_custom_call.1} parent=11 // pred_region
          _
        $region40: #{tpu_custom_call.1} parent=11 // pred_fallthru
          _
        // Predicated region
        $region41: #{tpu_custom_call.1} parent=11 // pred_check
          %p276 = pneg %p214
        $region42: #{tpu_custom_call.1} parent=11 // pred_check_branch
          %278 = sbr.rel (%p276) target = $region44
        $region43: #{tpu_custom_call.1} parent=11 // pred_region
          _
        $region44: #{tpu_custom_call.1} parent=11 // pred_fallthru
          _
      $region12: #{tpu_custom_call.1} parent=5 // pred_fallthru
        _
      %p279 = scmp.lt.s32.totalorder %s20, 3
      // Predicated region
      $region45: #{tpu_custom_call.1} parent=5 // pred_check
        %p280 = pneg %p279
      $region46: #{tpu_custom_call.1} parent=5 // pred_check_branch
        %282 = sbr.rel (%p280) target = $region48
      $region47: #{tpu_custom_call.1} parent=5 // pred_region
        // Predicated region
        $region49: #{tpu_custom_call.1} parent=47 // pred_check
          %p283 = pneg %p40
        $region50: #{tpu_custom_call.1} parent=47 // pred_check_branch
          %285 = sbr.rel (%p283) target = $region52
        $region51: #{tpu_custom_call.1} parent=47 // pred_region
          %s286 = sand.u32 %s30, 1
          %s287 = sand.u32 %s30, 1
          %s288 = smul.addr %s287, 8
          %s289 = scalar_lea.vmem [#allocation3], %s288
          %s290 = smul.addr %s20, 4
          %s291 = scalar_lea.vmem %s0, %s290
          // Predicated region
          $region53: #{tpu_custom_call.1} parent=51 // pred_check
            _
          $region54: #{tpu_custom_call.1} parent=51 // pred_check_branch
            %293 = sbr.rel (0) target = $region56
          $region55: #{tpu_custom_call.1} parent=51 // pred_region
            // Predicated region
            $region57: #{tpu_custom_call.1} parent=55 // pred_check
              _
            $region58: #{tpu_custom_call.1} parent=55 // pred_check_branch
              %295 = sbr.rel target = $region60
            $region59: #{tpu_custom_call.1} parent=55 // pred_region
              // Predicated region
              $region72: #{tpu_custom_call.1} parent=59 // pred_check
                _
              $region73: #{tpu_custom_call.1} parent=59 // pred_check_branch
                %313 = sbr.rel (0) target = $region75
              $region74: #{tpu_custom_call.1} parent=59 // pred_region
                loop: start=0, step=1, limit=1
                $region76: #{tpu_custom_call.1} parent=74 // loop_pre_header
                  _
                $region77: #{tpu_custom_call.1} parent=74 // loop_header
                  %s315 = sphi 0, %s319
                  %p316 = scmp.ge.s32.totalorder %s315, 1
                  %s320 = sphi %s291, %s291
                  %s321 = sphi %s289, %s289
                $region78: #{tpu_custom_call.1} parent=74 // loop_header_branch
                  %318 = sbr.rel (%p316) target = $region82
                $region79: #{tpu_custom_call.1} parent=74 // loop_body
                  _
                $region80: #{tpu_custom_call.1} parent=74 // loop_footer
                  %s319 = sadd.s32 1, %s315
                $region81: #{tpu_custom_call.1} parent=74 // loop_footer_branch
                  %314 = sbr.rel target = $region77
                $region82: #{tpu_custom_call.1} parent=74 // loop_exit
                  _
                %s323 = ssub.s32 16, 1
                loop: start=0, step=1, limit=1
                $region83: #{tpu_custom_call.1} parent=74 // loop_pre_header
                  _
                $region84: #{tpu_custom_call.1} parent=74 // loop_header
                  %s325 = sphi 0, %s329
                  %p326 = scmp.ge.s32.totalorder %s325, 1
                  %s330 = sphi %s291, %s291
                  %s331 = sphi %s289, %s289
                $region85: #{tpu_custom_call.1} parent=74 // loop_header_branch
                  %328 = sbr.rel (%p326) target = $region89
                $region86: #{tpu_custom_call.1} parent=74 // loop_body
                  %v332 = vld [vmem:[%s330] sm:%s323]
                  %333 = vst [vmem:[%s331] sm:%s323] %v332
                  %v334 = vld [vmem:[%s330 + $0xc] sm:%s323]
                  %335 = vst [vmem:[%s331 + $0x4] sm:%s323] %v334
                $region87: #{tpu_custom_call.1} parent=74 // loop_footer
                  %s329 = sadd.s32 1, %s325
                $region88: #{tpu_custom_call.1} parent=74 // loop_footer_branch
                  %324 = sbr.rel target = $region84
                $region89: #{tpu_custom_call.1} parent=74 // loop_exit
                  _
              $region75: #{tpu_custom_call.1} parent=59 // pred_fallthru
                _
            $region60: #{tpu_custom_call.1} parent=55 // pred_fallthru
              _
            // Predicated region
            $region61: #{tpu_custom_call.1} parent=55 // pred_check
              _
            $region62: #{tpu_custom_call.1} parent=55 // pred_check_branch
              %297 = sbr.rel (0) target = $region64
            $region63: #{tpu_custom_call.1} parent=55 // pred_region
              %s299 = ssub.s32 16, 1
              loop: start=0, step=1, limit=1
              $region65: #{tpu_custom_call.1} parent=63 // loop_pre_header
                _
              $region66: #{tpu_custom_call.1} parent=63 // loop_header
                %s301 = sphi 0, %s305
                %p302 = scmp.ge.s32.totalorder %s301, 1
                %s306 = sphi %s291, %s291
                %s307 = sphi %s289, %s289
              $region67: #{tpu_custom_call.1} parent=63 // loop_header_branch
                %304 = sbr.rel (%p302) target = $region71
              $region68: #{tpu_custom_call.1} parent=63 // loop_body
                %v308 = vld [vmem:[%s306] sm:%s299]
                %309 = vst [vmem:[%s307] sm:%s299] %v308
                %v310 = vld [vmem:[%s306 + $0xc] sm:%s299]
                %311 = vst [vmem:[%s307 + $0x4] sm:%s299] %v310
              $region69: #{tpu_custom_call.1} parent=63 // loop_footer
                %s305 = sadd.s32 1, %s301
              $region70: #{tpu_custom_call.1} parent=63 // loop_footer_branch
                %300 = sbr.rel target = $region66
              $region71: #{tpu_custom_call.1} parent=63 // loop_exit
                _
            $region64: #{tpu_custom_call.1} parent=55 // pred_fallthru
              _
          $region56: #{tpu_custom_call.1} parent=51 // pred_fallthru
            _
          %336 = vnop
        $region52: #{tpu_custom_call.1} parent=47 // pred_fallthru
          _
      $region48: #{tpu_custom_call.1} parent=5 // pred_fallthru
        _
      %p337 = scmp.le.s32.totalorder 1, %s20
      %p338 = scmp.lt.s32.totalorder %s20, 4
      %p339 = pnand %p337, %p338
      %p340 = pneg %p339
      // Predicated region
      $region90: #{tpu_custom_call.1} parent=5 // pred_check
        _
      $region91: #{tpu_custom_call.1} parent=5 // pred_check_branch
        %342 = sbr.rel (%p339) target = $region93
      $region92: #{tpu_custom_call.1} parent=5 // pred_region
        %s343 = ssub.s32 %s20, 1
        %s344 = sand.u32 %s33, 1
        %s345 = sand.u32 %s33, 1
        %s346 = smul.addr %s345, 8
        %s347 = scalar_lea.vmem [#allocation3], %s346
        // Predicated region
        $region94: #{tpu_custom_call.1} parent=92 // pred_check
          %p348 = pneg %p46
        $region95: #{tpu_custom_call.1} parent=92 // pred_check_branch
          %350 = sbr.rel (%p348) target = $region97
        $region96: #{tpu_custom_call.1} parent=92 // pred_region
          _
        $region97: #{tpu_custom_call.1} parent=92 // pred_fallthru
          _
        %s351 = sand.u32 %s33, 1
        %s352 = sand.u32 %s33, 1
        %s353 = smul.addr %s352, 8
        %s354 = scalar_lea.vmem [#allocation3], %s353
        %p355 = pneg %p46
        %p356 = pneg %p43
        %p357 = pneg %p67
        %p358 = pneg %p64
        %p359 = pneg %p88
        %p360 = pneg %p85
        %p361 = pneg %p109
        %p362 = pneg %p106
        %p363 = pneg %p130
        %p364 = pneg %p127
        %p365 = pneg %p151
        %p366 = pneg %p148
        %p367 = pneg %p172
        %p368 = pneg %p169
        %p369 = pneg %p193
        %p370 = pneg %p190
        %p371 = pneg %p214
        %p372 = pneg %p211
        %p373 = pneg %p240
        %p374 = pneg %p237
        %s375 = sand.u32 %s227, 1
        %s376 = scalar_lea.sflag [#allocation5], %s375
        %s377 = sand.u32 %s227, 1
        %s378 = scalar_lea.vmem [#allocation4], %s377
        %v380 = vld [vmem:[%s347] sm:$0xf]
        %v381 = vld [vmem:[%s347 + $0x4] sm:$0x7]
        %v382 = vld [vmem:[%s1] sm:$0xf]
        %v383 = vld [vmem:[%s1 + $0x4] sm:$0xf]
        %v384 = vld [vmem:[%s1 + $0x8] sm:$0xf]
        %v385 = vld [vmem:[%s1 + $0xc] sm:$0xf]
        %v386 = vld [vmem:[%s1 + $0x10] sm:$0xf]
        %v387 = vld [vmem:[%s1 + $0x14] sm:$0xf]
        %v388 = vld [vmem:[%s1 + $0x18] sm:$0xf]
        %v389 = vld [vmem:[%s1 + $0x1c] sm:$0xf]
        %v390 = vld [vmem:[%s1 + $0x20] sm:$0xf]
        %v391 = vld [vmem:[%s1 + $0x24] sm:$0xf]
        %v392 = vld [vmem:[%s1 + $0x28] sm:$0xf]
        %v393 = vld [vmem:[%s1 + $0x2c] sm:$0xf]
        %v394 = vld [vmem:[%s1 + $0x30] sm:$0xf]
        %v395 = vld [vmem:[%s1 + $0x34] sm:$0xf]
        %v396 = vld [vmem:[%s1 + $0x38] sm:$0xf]
        %v397 = vld [vmem:[%s1 + $0x3c] sm:$0xf]
        %v398 = vld [vmem:[%s2] sm:$0xff]
        %v399 = vld [vmem:[%s2 + $0x8] sm:$0xff]
        %v400 = vld [vmem:[%s2 + $0x10] sm:$0xff]
        %v401 = vld [vmem:[%s2 + $0x18] sm:$0xff]
        %v402 = vld [vmem:[%s2 + $0x20] sm:$0xff]
        %v403 = vld [vmem:[%s2 + $0x28] sm:$0xff]
        %v404 = vld [vmem:[%s2 + $0x30] sm:$0xff]
        %v405 = vld [vmem:[%s2 + $0x38] sm:$0xff]
        %v406 = vld [vmem:[%s2 + $0x40] sm:$0xff]
        %v407 = vld [vmem:[%s2 + $0x48] sm:$0xff]
        %v408 = vld [vmem:[%s2 + $0x50] sm:$0xff]
        %v409 = vld [vmem:[%s2 + $0x58] sm:$0xff]
        %v410 = vld [vmem:[%s2 + $0x60] sm:$0xff]
        %v411 = vld [vmem:[%s2 + $0x68] sm:$0xff]
        %v412 = vld [vmem:[%s2 + $0x70] sm:$0xff]
        %v413 = vld [vmem:[%s2 + $0x78] sm:$0xff]
        %415 = vset.pattern.permute.xlu0 0
        %416 = vperm.xlu0 %415, %v398
        %v417 = vpop.permute.xlu0 %416
        %420 = vset.pattern.permute.xlu0 0
        %421 = vperm.xlu0 %420, %v399
        %v422 = vpop.permute.xlu0 %421
        %425 = vset.pattern.permute.xlu0 0
        %426 = vperm.xlu0 %425, %v400
        %v427 = vpop.permute.xlu0 %426
        %430 = vset.pattern.permute.xlu0 0
        %431 = vperm.xlu0 %430, %v401
        %v432 = vpop.permute.xlu0 %431
        %435 = vset.pattern.permute.xlu0 0
        %436 = vperm.xlu0 %435, %v402
        %v437 = vpop.permute.xlu0 %436
        %440 = vset.pattern.permute.xlu0 0
        %441 = vperm.xlu0 %440, %v403
        %v442 = vpop.permute.xlu0 %441
        %445 = vset.pattern.permute.xlu0 0
        %446 = vperm.xlu0 %445, %v404
        %v447 = vpop.permute.xlu0 %446
        %450 = vset.pattern.permute.xlu0 0
        %451 = vperm.xlu0 %450, %v405
        %v452 = vpop.permute.xlu0 %451
        %455 = vset.pattern.permute.xlu0 0
        %456 = vperm.xlu0 %455, %v406
        %v457 = vpop.permute.xlu0 %456
        %460 = vset.pattern.permute.xlu0 0
        %461 = vperm.xlu0 %460, %v407
        %v462 = vpop.permute.xlu0 %461
        %465 = vset.pattern.permute.xlu0 0
        %466 = vperm.xlu0 %465, %v408
        %v467 = vpop.permute.xlu0 %466
        %470 = vset.pattern.permute.xlu0 0
        %471 = vperm.xlu0 %470, %v409
        %v472 = vpop.permute.xlu0 %471
        %475 = vset.pattern.permute.xlu0 0
        %476 = vperm.xlu0 %475, %v410
        %v477 = vpop.permute.xlu0 %476
        %480 = vset.pattern.permute.xlu0 0
        %481 = vperm.xlu0 %480, %v411
        %v482 = vpop.permute.xlu0 %481
        %485 = vset.pattern.permute.xlu0 0
        %486 = vperm.xlu0 %485, %v412
        %v487 = vpop.permute.xlu0 %486
        %490 = vset.pattern.permute.xlu0 0
        %491 = vperm.xlu0 %490, %v413
        %v492 = vpop.permute.xlu0 %491
        %v510 = vunpack.c.l.b16 %v382
        %v511 = vunpack.c.l.b16 %v383
        %v512 = vunpack.c.l.b16 %v384
        %v513 = vunpack.c.l.b16 %v385
        %v514 = vunpack.c.l.b16 %v386
        %v515 = vunpack.c.l.b16 %v387
        %v516 = vunpack.c.l.b16 %v388
        %v517 = vunpack.c.l.b16 %v389
        %v518 = vunpack.c.l.b16 %v390
        %v519 = vunpack.c.l.b16 %v391
        %v520 = vunpack.c.l.b16 %v392
        %v521 = vunpack.c.l.b16 %v393
        %v522 = vunpack.c.l.b16 %v394
        %v523 = vunpack.c.l.b16 %v395
        %v524 = vunpack.c.l.b16 %v396
        %v525 = vunpack.c.l.b16 %v397
        %v526 = vpack.c.b16 %v511, %v510
        %v527 = vpack.c.b16 %v513, %v512
        %v528 = vpack.c.b16 %v515, %v514
        %v529 = vpack.c.b16 %v517, %v516
        %v530 = vpack.c.b16 %v519, %v518
        %v531 = vpack.c.b16 %v521, %v520
        %v532 = vpack.c.b16 %v523, %v522
        %v533 = vpack.c.b16 %v525, %v524
        %v536 = vunpack.c.l.b16 %v380
        %v537 = vunpack.c.l.b16 %v381
        %v538 = vpack.c.b16 %v537, %v536
        %vm539 = vcmask 113664
        %v541 = vsel %vm539, %v526, 0
        %v544 = vsel %vm539, %v527, 0
        %v547 = vsel %vm539, %v528, 0
        %v550 = vsel %vm539, %v529, 0
        %v553 = vsel %vm539, %v530, 0
        %v556 = vsel %vm539, %v531, 0
        %v559 = vsel %vm539, %v532, 0
        %v562 = vsel %vm539, %v533, 0
        %vm564 = vcmask 1046528
        %v566 = vsel %vm564, %v538, 0
        %568 = vmatprep.subr.bf16.mxu0 0
        %569 = vmatpush1.bf16.msra.mxu0 0
        %570 = vmatprep.subr.bf16.mxu0 0
        %571 = vmatpush1.bf16.msra.mxu0 0
        %572 = vmatprep.subr.bf16.mxu0 0
        %573 = vmatpush1.bf16.msra.mxu0 0
        %574 = vmatprep.subr.bf16.mxu0 0
        %575 = vmatpush1.bf16.msra.mxu0 0
        %576 = vmatprep.subr.bf16.mxu0 0
        %577 = vmatpush1.bf16.msra.mxu0 0
        %578 = vmatprep.subr.bf16.mxu0 0
        %579 = vmatpush1.bf16.msra.mxu0 0
        %580 = vmatprep.subr.bf16.mxu0 0
        %581 = vmatpush1.bf16.msra.mxu0 0
        %582 = vmatprep.subr.bf16.mxu0 0
        %583 = vmatpush1.bf16.msra.mxu0 %v566
        %584 = vmatprep.subr.bf16.mxu0 0
        %585 = vmatpush2.bf16.msra.mxu0 0
        %586 = vmatprep.subr.bf16.mxu0 0
        %587 = vmatpush2.bf16.msra.mxu0 0
        %588 = vmatprep.subr.bf16.mxu0 0
        %589 = vmatpush2.bf16.msra.mxu0 0
        %590 = vmatprep.subr.bf16.mxu0 0
        %591 = vmatpush2.bf16.msra.mxu0 0
        %592 = vmatprep.subr.bf16.mxu0 0
        %593 = vmatpush2.bf16.msra.mxu0 0
        %594 = vmatprep.subr.bf16.mxu0 0
        %595 = vmatpush2.bf16.msra.mxu0 0
        %596 = vmatprep.subr.bf16.mxu0 0
        %597 = vmatpush2.bf16.msra.mxu0 0
        %598 = vmatprep.subr.bf16.mxu0 0
        %599 = vmatpush2.bf16.msra.mxu0 0
        %600 = vmatprep.mubr.bf16.mxu0 0
        %601 = vmatmul.mubr.bf16.gmra.mxu0 %v541
        %v602 = vpop.f32.mrf.mxu0
        %v603 = vadd.f32 %v417, %v602
        %v604 = vpop.f32.mrf.mxu0
        %v605 = vpop.f32.mrf.mxu0
        %v606 = vadd.f32 %v422, %v605
        %v607 = vpop.f32.mrf.mxu0
        %608 = vmatprep.mubr.bf16.mxu0 0
        %609 = vmatmul.mubr.bf16.gmra.mxu0 %v544
        %v610 = vpop.f32.mrf.mxu0
        %v611 = vadd.f32 %v427, %v610
        %v612 = vpop.f32.mrf.mxu0
        %v613 = vpop.f32.mrf.mxu0
        %v614 = vadd.f32 %v432, %v613
        %v615 = vpop.f32.mrf.mxu0
        %616 = vmatprep.mubr.bf16.mxu0 0
        %617 = vmatmul.mubr.bf16.gmra.mxu0 %v547
        %v618 = vpop.f32.mrf.mxu0
        %v619 = vadd.f32 %v437, %v618
        %v620 = vpop.f32.mrf.mxu0
        %v621 = vpop.f32.mrf.mxu0
        %v622 = vadd.f32 %v442, %v621
        %v623 = vpop.f32.mrf.mxu0
        %624 = vmatprep.mubr.bf16.mxu0 0
        %625 = vmatmul.mubr.bf16.gmra.mxu0 %v550
        %v626 = vpop.f32.mrf.mxu0
        %v627 = vadd.f32 %v447, %v626
        %v628 = vpop.f32.mrf.mxu0
        %v629 = vpop.f32.mrf.mxu0
        %v630 = vadd.f32 %v452, %v629
        %v631 = vpop.f32.mrf.mxu0
        %632 = vmatprep.mubr.bf16.mxu0 0
        %633 = vmatmul.mubr.bf16.gmra.mxu0 %v553
        %v634 = vpop.f32.mrf.mxu0
        %v635 = vadd.f32 %v457, %v634
        %v636 = vpop.f32.mrf.mxu0
        %v637 = vpop.f32.mrf.mxu0
        %v638 = vadd.f32 %v462, %v637
        %v639 = vpop.f32.mrf.mxu0
        %640 = vmatprep.mubr.bf16.mxu0 0
        %641 = vmatmul.mubr.bf16.gmra.mxu0 %v556
        %v642 = vpop.f32.mrf.mxu0
        %v643 = vadd.f32 %v467, %v642
        %v644 = vpop.f32.mrf.mxu0
        %v645 = vpop.f32.mrf.mxu0
        %v646 = vadd.f32 %v472, %v645
        %v647 = vpop.f32.mrf.mxu0
        %648 = vmatprep.mubr.bf16.mxu0 0
        %649 = vmatmul.mubr.bf16.gmra.mxu0 %v559
        %v650 = vpop.f32.mrf.mxu0
        %v651 = vadd.f32 %v477, %v650
        %v652 = vpop.f32.mrf.mxu0
        %v653 = vpop.f32.mrf.mxu0
        %v654 = vadd.f32 %v482, %v653
        %v655 = vpop.f32.mrf.mxu0
        %656 = vmatprep.mubr.bf16.mxu0 0
        %657 = vmatmul.mubr.bf16.gmra.mxu0 %v562
        %v658 = vpop.f32.mrf.mxu0
        %v659 = vadd.f32 %v487, %v658
        %v660 = vpop.f32.mrf.mxu0
        %v661 = vpop.f32.mrf.mxu0
        %v662 = vadd.f32 %v492, %v661
        %v663 = vpop.f32.mrf.mxu0
        %664 = vdwg.mxu0
        %v665 = vpack.c.bf16 %v606, %v603
        %v666 = vpack.c.bf16 %v614, %v611
        %v667 = vpack.c.bf16 %v622, %v619
        %v668 = vpack.c.bf16 %v630, %v627
        %v669 = vpack.c.bf16 %v638, %v635
        %v670 = vpack.c.bf16 %v646, %v643
        %v671 = vpack.c.bf16 %v654, %v651
        %v672 = vpack.c.bf16 %v662, %v659
        %v673 = vmax.bf16 %v665, 0
        %v674 = vmax.bf16 %v666, 0
        %v675 = vmax.bf16 %v667, 0
        %v676 = vmax.bf16 %v668, 0
        %v677 = vmax.bf16 %v669, 0
        %v678 = vmax.bf16 %v670, 0
        %v679 = vmax.bf16 %v671, 0
        %v680 = vmax.bf16 %v672, 0
        %v681 = vld [vmem:[%s3] sm:$0xf]
        %v682 = vld [vmem:[%s3 + $0x4] sm:$0xf]
        %v683 = vld [vmem:[%s3 + $0x8] sm:$0xf]
        %v684 = vld [vmem:[%s3 + $0xc] sm:$0xf]
        %v685 = vld [vmem:[%s3 + $0x10] sm:$0xf]
        %v686 = vld [vmem:[%s3 + $0x14] sm:$0xf]
        %v687 = vld [vmem:[%s3 + $0x18] sm:$0xf]
        %v688 = vld [vmem:[%s3 + $0x1c] sm:$0xf]
        %v689 = vld [vmem:[%s3 + $0x20] sm:$0xf]
        %v690 = vld [vmem:[%s3 + $0x24] sm:$0xf]
        %v691 = vld [vmem:[%s3 + $0x28] sm:$0xf]
        %v692 = vld [vmem:[%s3 + $0x2c] sm:$0xf]
        %v693 = vld [vmem:[%s3 + $0x30] sm:$0xf]
        %v694 = vld [vmem:[%s3 + $0x34] sm:$0xf]
        %v695 = vld [vmem:[%s3 + $0x38] sm:$0xf]
        %v696 = vld [vmem:[%s3 + $0x3c] sm:$0xf]
        %v697 = vld [vmem:[%s3 + $0x40] sm:$0xf]
        %v698 = vld [vmem:[%s3 + $0x44] sm:$0xf]
        %v699 = vld [vmem:[%s3 + $0x48] sm:$0xf]
        %v700 = vld [vmem:[%s3 + $0x4c] sm:$0xf]
        %v701 = vld [vmem:[%s3 + $0x50] sm:$0xf]
        %v702 = vld [vmem:[%s3 + $0x54] sm:$0xf]
        %v703 = vld [vmem:[%s3 + $0x58] sm:$0xf]
        %v704 = vld [vmem:[%s3 + $0x5c] sm:$0xf]
        %v705 = vld [vmem:[%s3 + $0x60] sm:$0xf]
        %v706 = vld [vmem:[%s3 + $0x64] sm:$0xf]
        %v707 = vld [vmem:[%s3 + $0x68] sm:$0xf]
        %v708 = vld [vmem:[%s3 + $0x6c] sm:$0xf]
        %v709 = vld [vmem:[%s3 + $0x70] sm:$0xf]
        %v710 = vld [vmem:[%s3 + $0x74] sm:$0xf]
        %v711 = vld [vmem:[%s3 + $0x78] sm:$0xf]
        %v712 = vld [vmem:[%s3 + $0x7c] sm:$0xf]
        %v713 = vld [vmem:[%s4] sm:$0xff]
        %v714 = vld [vmem:[%s4 + $0x8] sm:$0xff]
        %v715 = vld [vmem:[%s4 + $0x10] sm:$0xff]
        %v716 = vld [vmem:[%s4 + $0x18] sm:$0xff]
        %v717 = vld [vmem:[%s4 + $0x20] sm:$0xff]
        %v718 = vld [vmem:[%s4 + $0x28] sm:$0xff]
        %v719 = vld [vmem:[%s4 + $0x30] sm:$0xff]
        %v720 = vld [vmem:[%s4 + $0x38] sm:$0xff]
        %v721 = vld [vmem:[%s4 + $0x40] sm:$0xff]
        %v722 = vld [vmem:[%s4 + $0x48] sm:$0xff]
        %v723 = vld [vmem:[%s4 + $0x50] sm:$0xff]
        %v724 = vld [vmem:[%s4 + $0x58] sm:$0xff]
        %v725 = vld [vmem:[%s4 + $0x60] sm:$0xff]
        %v726 = vld [vmem:[%s4 + $0x68] sm:$0xff]
        %v727 = vld [vmem:[%s4 + $0x70] sm:$0xff]
        %v728 = vld [vmem:[%s4 + $0x78] sm:$0xff]
        %v729 = vld [vmem:[%s4 + $0x80] sm:$0xff]
        %v730 = vld [vmem:[%s4 + $0x88] sm:$0xff]
        %v731 = vld [vmem:[%s4 + $0x90] sm:$0xff]
        %v732 = vld [vmem:[%s4 + $0x98] sm:$0xff]
        %v733 = vld [vmem:[%s4 + $0xa0] sm:$0xff]
        %v734 = vld [vmem:[%s4 + $0xa8] sm:$0xff]
        %v735 = vld [vmem:[%s4 + $0xb0] sm:$0xff]
        %v736 = vld [vmem:[%s4 + $0xb8] sm:$0xff]
        %v737 = vld [vmem:[%s4 + $0xc0] sm:$0xff]
        %v738 = vld [vmem:[%s4 + $0xc8] sm:$0xff]
        %v739 = vld [vmem:[%s4 + $0xd0] sm:$0xff]
        %v740 = vld [vmem:[%s4 + $0xd8] sm:$0xff]
        %v741 = vld [vmem:[%s4 + $0xe0] sm:$0xff]
        %v742 = vld [vmem:[%s4 + $0xe8] sm:$0xff]
        %v743 = vld [vmem:[%s4 + $0xf0] sm:$0xff]
        %v744 = vld [vmem:[%s4 + $0xf8] sm:$0xff]
        %746 = vset.pattern.permute.xlu0 0
        %747 = vperm.xlu0 %746, %v713
        %v748 = vpop.permute.xlu0 %747
        %751 = vset.pattern.permute.xlu0 0
        %752 = vperm.xlu0 %751, %v714
        %v753 = vpop.permute.xlu0 %752
        %756 = vset.pattern.permute.xlu0 0
        %757 = vperm.xlu0 %756, %v715
        %v758 = vpop.permute.xlu0 %757
        %761 = vset.pattern.permute.xlu0 0
        %762 = vperm.xlu0 %761, %v716
        %v763 = vpop.permute.xlu0 %762
        %766 = vset.pattern.permute.xlu0 0
        %767 = vperm.xlu0 %766, %v717
        %v768 = vpop.permute.xlu0 %767
        %771 = vset.pattern.permute.xlu0 0
        %772 = vperm.xlu0 %771, %v718
        %v773 = vpop.permute.xlu0 %772
        %776 = vset.pattern.permute.xlu0 0
        %777 = vperm.xlu0 %776, %v719
        %v778 = vpop.permute.xlu0 %777
        %781 = vset.pattern.permute.xlu0 0
        %782 = vperm.xlu0 %781, %v720
        %v783 = vpop.permute.xlu0 %782
        %786 = vset.pattern.permute.xlu0 0
        %787 = vperm.xlu0 %786, %v721
        %v788 = vpop.permute.xlu0 %787
        %791 = vset.pattern.permute.xlu0 0
        %792 = vperm.xlu0 %791, %v722
        %v793 = vpop.permute.xlu0 %792
        %796 = vset.pattern.permute.xlu0 0
        %797 = vperm.xlu0 %796, %v723
        %v798 = vpop.permute.xlu0 %797
        %801 = vset.pattern.permute.xlu0 0
        %802 = vperm.xlu0 %801, %v724
        %v803 = vpop.permute.xlu0 %802
        %806 = vset.pattern.permute.xlu0 0
        %807 = vperm.xlu0 %806, %v725
        %v808 = vpop.permute.xlu0 %807
        %811 = vset.pattern.permute.xlu0 0
        %812 = vperm.xlu0 %811, %v726
        %v813 = vpop.permute.xlu0 %812
        %816 = vset.pattern.permute.xlu0 0
        %817 = vperm.xlu0 %816, %v727
        %v818 = vpop.permute.xlu0 %817
        %821 = vset.pattern.permute.xlu0 0
        %822 = vperm.xlu0 %821, %v728
        %v823 = vpop.permute.xlu0 %822
        %826 = vset.pattern.permute.xlu0 0
        %827 = vperm.xlu0 %826, %v729
        %v828 = vpop.permute.xlu0 %827
        %831 = vset.pattern.permute.xlu0 0
        %832 = vperm.xlu0 %831, %v730
        %v833 = vpop.permute.xlu0 %832
        %836 = vset.pattern.permute.xlu0 0
        %837 = vperm.xlu0 %836, %v731
        %v838 = vpop.permute.xlu0 %837
        %841 = vset.pattern.permute.xlu0 0
        %842 = vperm.xlu0 %841, %v732
        %v843 = vpop.permute.xlu0 %842
        %846 = vset.pattern.permute.xlu0 0
        %847 = vperm.xlu0 %846, %v733
        %v848 = vpop.permute.xlu0 %847
        %851 = vset.pattern.permute.xlu0 0
        %852 = vperm.xlu0 %851, %v734
        %v853 = vpop.permute.xlu0 %852
        %856 = vset.pattern.permute.xlu0 0
        %857 = vperm.xlu0 %856, %v735
        %v858 = vpop.permute.xlu0 %857
        %861 = vset.pattern.permute.xlu0 0
        %862 = vperm.xlu0 %861, %v736
        %v863 = vpop.permute.xlu0 %862
        %866 = vset.pattern.permute.xlu0 0
        %867 = vperm.xlu0 %866, %v737
        %v868 = vpop.permute.xlu0 %867
        %871 = vset.pattern.permute.xlu0 0
        %872 = vperm.xlu0 %871, %v738
        %v873 = vpop.permute.xlu0 %872
        %876 = vset.pattern.permute.xlu0 0
        %877 = vperm.xlu0 %876, %v739
        %v878 = vpop.permute.xlu0 %877
        %881 = vset.pattern.permute.xlu0 0
        %882 = vperm.xlu0 %881, %v740
        %v883 = vpop.permute.xlu0 %882
        %886 = vset.pattern.permute.xlu0 0
        %887 = vperm.xlu0 %886, %v741
        %v888 = vpop.permute.xlu0 %887
        %891 = vset.pattern.permute.xlu0 0
        %892 = vperm.xlu0 %891, %v742
        %v893 = vpop.permute.xlu0 %892
        %896 = vset.pattern.permute.xlu0 0
        %897 = vperm.xlu0 %896, %v743
        %v898 = vpop.permute.xlu0 %897
        %901 = vset.pattern.permute.xlu0 0
        %902 = vperm.xlu0 %901, %v744
        %v903 = vpop.permute.xlu0 %902
        %v937 = vunpack.c.l.b16 %v681
        %v938 = vunpack.c.l.b16 %v682
        %v939 = vunpack.c.l.b16 %v683
        %v940 = vunpack.c.l.b16 %v684
        %v941 = vunpack.c.l.b16 %v685
        %v942 = vunpack.c.l.b16 %v686
        %v943 = vunpack.c.l.b16 %v687
        %v944 = vunpack.c.l.b16 %v688
        %v945 = vunpack.c.l.b16 %v689
        %v946 = vunpack.c.l.b16 %v690
        %v947 = vunpack.c.l.b16 %v691
        %v948 = vunpack.c.l.b16 %v692
        %v949 = vunpack.c.l.b16 %v693
        %v950 = vunpack.c.l.b16 %v694
        %v951 = vunpack.c.l.b16 %v695
        %v952 = vunpack.c.l.b16 %v696
        %v953 = vunpack.c.l.b16 %v697
        %v954 = vunpack.c.l.b16 %v698
        %v955 = vunpack.c.l.b16 %v699
        %v956 = vunpack.c.l.b16 %v700
        %v957 = vunpack.c.l.b16 %v701
        %v958 = vunpack.c.l.b16 %v702
        %v959 = vunpack.c.l.b16 %v703
        %v960 = vunpack.c.l.b16 %v704
        %v961 = vunpack.c.l.b16 %v705
        %v962 = vunpack.c.l.b16 %v706
        %v963 = vunpack.c.l.b16 %v707
        %v964 = vunpack.c.l.b16 %v708
        %v965 = vunpack.c.l.b16 %v709
        %v966 = vunpack.c.l.b16 %v710
        %v967 = vunpack.c.l.b16 %v711
        %v968 = vunpack.c.l.b16 %v712
        %v969 = vpack.c.b16 %v938, %v937
        %v970 = vpack.c.b16 %v940, %v939
        %v971 = vpack.c.b16 %v942, %v941
        %v972 = vpack.c.b16 %v944, %v943
        %v973 = vpack.c.b16 %v946, %v945
        %v974 = vpack.c.b16 %v948, %v947
        %v975 = vpack.c.b16 %v950, %v949
        %v976 = vpack.c.b16 %v952, %v951
        %v977 = vpack.c.b16 %v954, %v953
        %v978 = vpack.c.b16 %v956, %v955
        %v979 = vpack.c.b16 %v958, %v957
        %v980 = vpack.c.b16 %v960, %v959
        %v981 = vpack.c.b16 %v962, %v961
        %v982 = vpack.c.b16 %v964, %v963
        %v983 = vpack.c.b16 %v966, %v965
        %v984 = vpack.c.b16 %v968, %v967
        %1001 = vmatprep.subr.bf16.mxu0 0
        %1002 = vmatpush1.bf16.msra.mxu0 %v680
        %1003 = vmatprep.subr.bf16.mxu0 0
        %1004 = vmatpush1.bf16.msra.mxu0 %v679
        %1005 = vmatprep.subr.bf16.mxu0 0
        %1006 = vmatpush1.bf16.msra.mxu0 %v678
        %1007 = vmatprep.subr.bf16.mxu0 0
        %1008 = vmatpush1.bf16.msra.mxu0 %v677
        %1009 = vmatprep.subr.bf16.mxu0 0
        %1010 = vmatpush1.bf16.msra.mxu0 %v676
        %1011 = vmatprep.subr.bf16.mxu0 0
        %1012 = vmatpush1.bf16.msra.mxu0 %v675
        %1013 = vmatprep.subr.bf16.mxu0 0
        %1014 = vmatpush1.bf16.msra.mxu0 %v674
        %1015 = vmatprep.subr.bf16.mxu0 0
        %1016 = vmatpush1.bf16.msra.mxu0 %v673
        %1017 = vmatprep.subr.bf16.mxu0 0
        %1018 = vmatpush2.bf16.msra.mxu0 0
        %1019 = vmatprep.subr.bf16.mxu0 0
        %1020 = vmatpush2.bf16.msra.mxu0 0
        %1021 = vmatprep.subr.bf16.mxu0 0
        %1022 = vmatpush2.bf16.msra.mxu0 0
        %1023 = vmatprep.subr.bf16.mxu0 0
        %1024 = vmatpush2.bf16.msra.mxu0 0
        %1025 = vmatprep.subr.bf16.mxu0 0
        %1026 = vmatpush2.bf16.msra.mxu0 0
        %1027 = vmatprep.subr.bf16.mxu0 0
        %1028 = vmatpush2.bf16.msra.mxu0 0
        %1029 = vmatprep.subr.bf16.mxu0 0
        %1030 = vmatpush2.bf16.msra.mxu0 0
        %1031 = vmatprep.subr.bf16.mxu0 0
        %1032 = vmatpush2.bf16.msra.mxu0 0
        %1033 = vmatprep.mubr.bf16.mxu0 0
        %1034 = vmatmul.mubr.bf16.gmra.mxu0 %v969
        %v1035 = vpop.f32.mrf.mxu0
        %v1036 = vadd.f32 %v748, %v1035
        %v1037 = vpop.f32.mrf.mxu0
        %v1038 = vpop.f32.mrf.mxu0
        %v1039 = vadd.f32 %v753, %v1038
        %v1040 = vpop.f32.mrf.mxu0
        %1041 = vmatprep.mubr.bf16.mxu0 0
        %1042 = vmatmul.mubr.bf16.gmra.mxu0 %v970
        %v1043 = vpop.f32.mrf.mxu0
        %v1044 = vadd.f32 %v758, %v1043
        %v1045 = vpop.f32.mrf.mxu0
        %v1046 = vpop.f32.mrf.mxu0
        %v1047 = vadd.f32 %v763, %v1046
        %v1048 = vpop.f32.mrf.mxu0
        %1049 = vmatprep.mubr.bf16.mxu0 0
        %1050 = vmatmul.mubr.bf16.gmra.mxu0 %v971
        %v1051 = vpop.f32.mrf.mxu0
        %v1052 = vadd.f32 %v768, %v1051
        %v1053 = vpop.f32.mrf.mxu0
        %v1054 = vpop.f32.mrf.mxu0
        %v1055 = vadd.f32 %v773, %v1054
        %v1056 = vpop.f32.mrf.mxu0
        %1057 = vmatprep.mubr.bf16.mxu0 0
        %1058 = vmatmul.mubr.bf16.gmra.mxu0 %v972
        %v1059 = vpop.f32.mrf.mxu0
        %v1060 = vadd.f32 %v778, %v1059
        %v1061 = vpop.f32.mrf.mxu0
        %v1062 = vpop.f32.mrf.mxu0
        %v1063 = vadd.f32 %v783, %v1062
        %v1064 = vpop.f32.mrf.mxu0
        %1065 = vmatprep.mubr.bf16.mxu0 0
        %1066 = vmatmul.mubr.bf16.gmra.mxu0 %v973
        %v1067 = vpop.f32.mrf.mxu0
        %v1068 = vadd.f32 %v788, %v1067
        %v1069 = vpop.f32.mrf.mxu0
        %v1070 = vpop.f32.mrf.mxu0
        %v1071 = vadd.f32 %v793, %v1070
        %v1072 = vpop.f32.mrf.mxu0
        %1073 = vmatprep.mubr.bf16.mxu0 0
        %1074 = vmatmul.mubr.bf16.gmra.mxu0 %v974
        %v1075 = vpop.f32.mrf.mxu0
        %v1076 = vadd.f32 %v798, %v1075
        %v1077 = vpop.f32.mrf.mxu0
        %v1078 = vpop.f32.mrf.mxu0
        %v1079 = vadd.f32 %v803, %v1078
        %v1080 = vpop.f32.mrf.mxu0
        %1081 = vmatprep.mubr.bf16.mxu0 0
        %1082 = vmatmul.mubr.bf16.gmra.mxu0 %v975
        %v1083 = vpop.f32.mrf.mxu0
        %v1084 = vadd.f32 %v808, %v1083
        %v1085 = vpop.f32.mrf.mxu0
        %v1086 = vpop.f32.mrf.mxu0
        %v1087 = vadd.f32 %v813, %v1086
        %v1088 = vpop.f32.mrf.mxu0
        %1089 = vmatprep.mubr.bf16.mxu0 0
        %1090 = vmatmul.mubr.bf16.gmra.mxu0 %v976
        %v1091 = vpop.f32.mrf.mxu0
        %v1092 = vadd.f32 %v818, %v1091
        %v1093 = vpop.f32.mrf.mxu0
        %v1094 = vpop.f32.mrf.mxu0
        %v1095 = vadd.f32 %v823, %v1094
        %v1096 = vpop.f32.mrf.mxu0
        %1097 = vmatprep.mubr.bf16.mxu0 0
        %1098 = vmatmul.mubr.bf16.gmra.mxu0 %v977
        %v1099 = vpop.f32.mrf.mxu0
        %v1100 = vadd.f32 %v828, %v1099
        %v1101 = vpop.f32.mrf.mxu0
        %v1102 = vpop.f32.mrf.mxu0
        %v1103 = vadd.f32 %v833, %v1102
        %v1104 = vpop.f32.mrf.mxu0
        %1105 = vmatprep.mubr.bf16.mxu0 0
        %1106 = vmatmul.mubr.bf16.gmra.mxu0 %v978
        %v1107 = vpop.f32.mrf.mxu0
        %v1108 = vadd.f32 %v838, %v1107
        %v1109 = vpop.f32.mrf.mxu0
        %v1110 = vpop.f32.mrf.mxu0
        %v1111 = vadd.f32 %v843, %v1110
        %v1112 = vpop.f32.mrf.mxu0
        %1113 = vmatprep.mubr.bf16.mxu0 0
        %1114 = vmatmul.mubr.bf16.gmra.mxu0 %v979
        %v1115 = vpop.f32.mrf.mxu0
        %v1116 = vadd.f32 %v848, %v1115
        %v1117 = vpop.f32.mrf.mxu0
        %v1118 = vpop.f32.mrf.mxu0
        %v1119 = vadd.f32 %v853, %v1118
        %v1120 = vpop.f32.mrf.mxu0
        %1121 = vmatprep.mubr.bf16.mxu0 0
        %1122 = vmatmul.mubr.bf16.gmra.mxu0 %v980
        %v1123 = vpop.f32.mrf.mxu0
        %v1124 = vadd.f32 %v858, %v1123
        %v1125 = vpop.f32.mrf.mxu0
        %v1126 = vpop.f32.mrf.mxu0
        %v1127 = vadd.f32 %v863, %v1126
        %v1128 = vpop.f32.mrf.mxu0
        %1129 = vmatprep.mubr.bf16.mxu0 0
        %1130 = vmatmul.mubr.bf16.gmra.mxu0 %v981
        %v1131 = vpop.f32.mrf.mxu0
        %v1132 = vadd.f32 %v868, %v1131
        %v1133 = vpop.f32.mrf.mxu0
        %v1134 = vpop.f32.mrf.mxu0
        %v1135 = vadd.f32 %v873, %v1134
        %v1136 = vpop.f32.mrf.mxu0
        %1137 = vmatprep.mubr.bf16.mxu0 0
        %1138 = vmatmul.mubr.bf16.gmra.mxu0 %v982
        %v1139 = vpop.f32.mrf.mxu0
        %v1140 = vadd.f32 %v878, %v1139
        %v1141 = vpop.f32.mrf.mxu0
        %v1142 = vpop.f32.mrf.mxu0
        %v1143 = vadd.f32 %v883, %v1142
        %v1144 = vpop.f32.mrf.mxu0
        %1145 = vmatprep.mubr.bf16.mxu0 0
        %1146 = vmatmul.mubr.bf16.gmra.mxu0 %v983
        %v1147 = vpop.f32.mrf.mxu0
        %v1148 = vadd.f32 %v888, %v1147
        %v1149 = vpop.f32.mrf.mxu0
        %v1150 = vpop.f32.mrf.mxu0
        %v1151 = vadd.f32 %v893, %v1150
        %v1152 = vpop.f32.mrf.mxu0
        %1153 = vmatprep.mubr.bf16.mxu0 0
        %1154 = vmatmul.mubr.bf16.gmra.mxu0 %v984
        %v1155 = vpop.f32.mrf.mxu0
        %v1156 = vadd.f32 %v898, %v1155
        %v1157 = vpop.f32.mrf.mxu0
        %v1158 = vpop.f32.mrf.mxu0
        %v1159 = vadd.f32 %v903, %v1158
        %v1160 = vpop.f32.mrf.mxu0
        %1161 = vdwg.mxu0
        %v1162 = vpack.c.bf16 %v1039, %v1036
        %v1163 = vpack.c.bf16 %v1047, %v1044
        %v1164 = vpack.c.bf16 %v1055, %v1052
        %v1165 = vpack.c.bf16 %v1063, %v1060
        %v1166 = vpack.c.bf16 %v1071, %v1068
        %v1167 = vpack.c.bf16 %v1079, %v1076
        %v1168 = vpack.c.bf16 %v1087, %v1084
        %v1169 = vpack.c.bf16 %v1095, %v1092
        %v1170 = vpack.c.bf16 %v1103, %v1100
        %v1171 = vpack.c.bf16 %v1111, %v1108
        %v1172 = vpack.c.bf16 %v1119, %v1116
        %v1173 = vpack.c.bf16 %v1127, %v1124
        %v1174 = vpack.c.bf16 %v1135, %v1132
        %v1175 = vpack.c.bf16 %v1143, %v1140
        %v1176 = vpack.c.bf16 %v1151, %v1148
        %v1177 = vpack.c.bf16 %v1159, %v1156
        %v1178 = vmax.bf16 %v1162, 0
        %v1179 = vmax.bf16 %v1163, 0
        %v1180 = vmax.bf16 %v1164, 0
        %v1181 = vmax.bf16 %v1165, 0
        %v1182 = vmax.bf16 %v1166, 0
        %v1183 = vmax.bf16 %v1167, 0
        %v1184 = vmax.bf16 %v1168, 0
        %v1185 = vmax.bf16 %v1169, 0
        %v1186 = vmax.bf16 %v1170, 0
        %v1187 = vmax.bf16 %v1171, 0
        %v1188 = vmax.bf16 %v1172, 0
        %v1189 = vmax.bf16 %v1173, 0
        %v1190 = vmax.bf16 %v1174, 0
        %v1191 = vmax.bf16 %v1175, 0
        %v1192 = vmax.bf16 %v1176, 0
        %v1193 = vmax.bf16 %v1177, 0
        %v1194 = vld [vmem:[%s5] sm:$0xff]
        %v1195 = vld [vmem:[%s5 + $0x8] sm:$0xff]
        %v1196 = vld [vmem:[%s5 + $0x10] sm:$0xff]
        %v1197 = vld [vmem:[%s5 + $0x18] sm:$0xff]
        %v1198 = vld [vmem:[%s5 + $0x20] sm:$0xff]
        %v1199 = vld [vmem:[%s5 + $0x28] sm:$0xff]
        %v1200 = vld [vmem:[%s5 + $0x30] sm:$0xff]
        %v1201 = vld [vmem:[%s5 + $0x38] sm:$0xff]
        %v1202 = vld [vmem:[%s5 + $0x40] sm:$0xff]
        %v1203 = vld [vmem:[%s5 + $0x48] sm:$0xff]
        %v1204 = vld [vmem:[%s5 + $0x50] sm:$0xff]
        %v1205 = vld [vmem:[%s5 + $0x58] sm:$0xff]
        %v1206 = vld [vmem:[%s5 + $0x60] sm:$0xff]
        %v1207 = vld [vmem:[%s5 + $0x68] sm:$0xff]
        %v1208 = vld [vmem:[%s5 + $0x70] sm:$0xff]
        %v1209 = vld [vmem:[%s5 + $0x78] sm:$0xff]
        %v1210 = vld [vmem:[%s6] sm:$0xff]
        %v1211 = vld [vmem:[%s6 + $0x8] sm:$0xff]
        %v1212 = vld [vmem:[%s6 + $0x10] sm:$0xff]
        %v1213 = vld [vmem:[%s6 + $0x18] sm:$0xff]
        %v1214 = vld [vmem:[%s6 + $0x20] sm:$0xff]
        %v1215 = vld [vmem:[%s6 + $0x28] sm:$0xff]
        %v1216 = vld [vmem:[%s6 + $0x30] sm:$0xff]
        %v1217 = vld [vmem:[%s6 + $0x38] sm:$0xff]
        %v1218 = vld [vmem:[%s6 + $0x40] sm:$0xff]
        %v1219 = vld [vmem:[%s6 + $0x48] sm:$0xff]
        %v1220 = vld [vmem:[%s6 + $0x50] sm:$0xff]
        %v1221 = vld [vmem:[%s6 + $0x58] sm:$0xff]
        %v1222 = vld [vmem:[%s6 + $0x60] sm:$0xff]
        %v1223 = vld [vmem:[%s6 + $0x68] sm:$0xff]
        %v1224 = vld [vmem:[%s6 + $0x70] sm:$0xff]
        %v1225 = vld [vmem:[%s6 + $0x78] sm:$0xff]
        %1227 = vset.pattern.permute.xlu0 0
        %1228 = vperm.xlu0 %1227, %v1210
        %v1229 = vpop.permute.xlu0 %1228
        %1232 = vset.pattern.permute.xlu0 0
        %1233 = vperm.xlu0 %1232, %v1211
        %v1234 = vpop.permute.xlu0 %1233
        %1237 = vset.pattern.permute.xlu0 0
        %1238 = vperm.xlu0 %1237, %v1212
        %v1239 = vpop.permute.xlu0 %1238
        %1242 = vset.pattern.permute.xlu0 0
        %1243 = vperm.xlu0 %1242, %v1213
        %v1244 = vpop.permute.xlu0 %1243
        %1247 = vset.pattern.permute.xlu0 0
        %1248 = vperm.xlu0 %1247, %v1214
        %v1249 = vpop.permute.xlu0 %1248
        %1252 = vset.pattern.permute.xlu0 0
        %1253 = vperm.xlu0 %1252, %v1215
        %v1254 = vpop.permute.xlu0 %1253
        %1257 = vset.pattern.permute.xlu0 0
        %1258 = vperm.xlu0 %1257, %v1216
        %v1259 = vpop.permute.xlu0 %1258
        %1262 = vset.pattern.permute.xlu0 0
        %1263 = vperm.xlu0 %1262, %v1217
        %v1264 = vpop.permute.xlu0 %1263
        %1267 = vset.pattern.permute.xlu0 0
        %1268 = vperm.xlu0 %1267, %v1218
        %v1269 = vpop.permute.xlu0 %1268
        %1272 = vset.pattern.permute.xlu0 0
        %1273 = vperm.xlu0 %1272, %v1219
        %v1274 = vpop.permute.xlu0 %1273
        %1277 = vset.pattern.permute.xlu0 0
        %1278 = vperm.xlu0 %1277, %v1220
        %v1279 = vpop.permute.xlu0 %1278
        %1282 = vset.pattern.permute.xlu0 0
        %1283 = vperm.xlu0 %1282, %v1221
        %v1284 = vpop.permute.xlu0 %1283
        %1287 = vset.pattern.permute.xlu0 0
        %1288 = vperm.xlu0 %1287, %v1222
        %v1289 = vpop.permute.xlu0 %1288
        %1292 = vset.pattern.permute.xlu0 0
        %1293 = vperm.xlu0 %1292, %v1223
        %v1294 = vpop.permute.xlu0 %1293
        %1297 = vset.pattern.permute.xlu0 0
        %1298 = vperm.xlu0 %1297, %v1224
        %v1299 = vpop.permute.xlu0 %1298
        %1302 = vset.pattern.permute.xlu0 0
        %1303 = vperm.xlu0 %1302, %v1225
        %v1304 = vpop.permute.xlu0 %1303
        %v1322 = vunpack.c.l.b16 %v1194
        %v1323 = vunpack.c.h.b16 %v1194
        %v1324 = vunpack.c.l.b16 %v1195
        %v1325 = vunpack.c.h.b16 %v1195
        %v1326 = vunpack.c.l.b16 %v1196
        %v1327 = vunpack.c.h.b16 %v1196
        %v1328 = vunpack.c.l.b16 %v1197
        %v1329 = vunpack.c.h.b16 %v1197
        %v1330 = vunpack.c.l.b16 %v1198
        %v1331 = vunpack.c.h.b16 %v1198
        %v1332 = vunpack.c.l.b16 %v1199
        %v1333 = vunpack.c.h.b16 %v1199
        %v1334 = vunpack.c.l.b16 %v1200
        %v1335 = vunpack.c.h.b16 %v1200
        %v1336 = vunpack.c.l.b16 %v1201
        %v1337 = vunpack.c.h.b16 %v1201
        %v1338 = vunpack.c.l.b16 %v1202
        %v1339 = vunpack.c.h.b16 %v1202
        %v1340 = vunpack.c.l.b16 %v1203
        %v1341 = vunpack.c.h.b16 %v1203
        %v1342 = vunpack.c.l.b16 %v1204
        %v1343 = vunpack.c.h.b16 %v1204
        %v1344 = vunpack.c.l.b16 %v1205
        %v1345 = vunpack.c.h.b16 %v1205
        %v1346 = vunpack.c.l.b16 %v1206
        %v1347 = vunpack.c.h.b16 %v1206
        %v1348 = vunpack.c.l.b16 %v1207
        %v1349 = vunpack.c.h.b16 %v1207
        %v1350 = vunpack.c.l.b16 %v1208
        %v1351 = vunpack.c.h.b16 %v1208
        %v1352 = vunpack.c.l.b16 %v1209
        %v1353 = vunpack.c.h.b16 %v1209
        %v1354 = vpack.c.b16 %v1324, %v1322
        %v1355 = vpack.c.b16 %v1325, %v1323
        %v1356 = vpack.c.b16 %v1328, %v1326
        %v1357 = vpack.c.b16 %v1329, %v1327
        %v1358 = vpack.c.b16 %v1332, %v1330
        %v1359 = vpack.c.b16 %v1333, %v1331
        %v1360 = vpack.c.b16 %v1336, %v1334
        %v1361 = vpack.c.b16 %v1337, %v1335
        %v1362 = vpack.c.b16 %v1340, %v1338
        %v1363 = vpack.c.b16 %v1341, %v1339
        %v1364 = vpack.c.b16 %v1344, %v1342
        %v1365 = vpack.c.b16 %v1345, %v1343
        %v1366 = vpack.c.b16 %v1348, %v1346
        %v1367 = vpack.c.b16 %v1349, %v1347
        %v1368 = vpack.c.b16 %v1352, %v1350
        %v1369 = vpack.c.b16 %v1353, %v1351
        %1386 = vmatprep.subr.bf16.mxu0 0
        %1387 = vmatpush1.bf16.msra.mxu0 %v1185
        %1388 = vmatprep.subr.bf16.mxu0 0
        %1389 = vmatpush1.bf16.msra.mxu0 %v1184
        %1390 = vmatprep.subr.bf16.mxu0 0
        %1391 = vmatpush1.bf16.msra.mxu0 %v1183
        %1392 = vmatprep.subr.bf16.mxu0 0
        %1393 = vmatpush1.bf16.msra.mxu0 %v1182
        %1394 = vmatprep.subr.bf16.mxu0 0
        %1395 = vmatpush1.bf16.msra.mxu0 %v1181
        %1396 = vmatprep.subr.bf16.mxu0 0
        %1397 = vmatpush1.bf16.msra.mxu0 %v1180
        %1398 = vmatprep.subr.bf16.mxu0 0
        %1399 = vmatpush1.bf16.msra.mxu0 %v1179
        %1400 = vmatprep.subr.bf16.mxu0 0
        %1401 = vmatpush1.bf16.msra.mxu0 %v1178
        %1402 = vmatprep.subr.bf16.mxu0 0
        %1403 = vmatpush2.bf16.msra.mxu0 %v1193
        %1404 = vmatprep.subr.bf16.mxu0 0
        %1405 = vmatpush2.bf16.msra.mxu0 %v1192
        %1406 = vmatprep.subr.bf16.mxu0 0
        %1407 = vmatpush2.bf16.msra.mxu0 %v1191
        %1408 = vmatprep.subr.bf16.mxu0 0
        %1409 = vmatpush2.bf16.msra.mxu0 %v1190
        %1410 = vmatprep.subr.bf16.mxu0 0
        %1411 = vmatpush2.bf16.msra.mxu0 %v1189
        %1412 = vmatprep.subr.bf16.mxu0 0
        %1413 = vmatpush2.bf16.msra.mxu0 %v1188
        %1414 = vmatprep.subr.bf16.mxu0 0
        %1415 = vmatpush2.bf16.msra.mxu0 %v1187
        %1416 = vmatprep.subr.bf16.mxu0 0
        %1417 = vmatpush2.bf16.msra.mxu0 %v1186
        %1418 = vmatprep.mubr.bf16.mxu0 %v1355
        %1419 = vmatmul.mubr.bf16.gmra.mxu0 %v1354
        %v1420 = vpop.f32.mrf.mxu0
        %v1421 = vadd.f32 %v1229, %v1420
        %v1422 = vpop.f32.mrf.mxu0
        %v1423 = vpop.f32.mrf.mxu0
        %v1424 = vadd.f32 %v1234, %v1423
        %v1425 = vpop.f32.mrf.mxu0
        %1426 = vmatprep.mubr.bf16.mxu0 %v1357
        %1427 = vmatmul.mubr.bf16.gmra.mxu0 %v1356
        %v1428 = vpop.f32.mrf.mxu0
        %v1429 = vadd.f32 %v1239, %v1428
        %v1430 = vpop.f32.mrf.mxu0
        %v1431 = vpop.f32.mrf.mxu0
        %v1432 = vadd.f32 %v1244, %v1431
        %v1433 = vpop.f32.mrf.mxu0
        %1434 = vmatprep.mubr.bf16.mxu0 %v1359
        %1435 = vmatmul.mubr.bf16.gmra.mxu0 %v1358
        %v1436 = vpop.f32.mrf.mxu0
        %v1437 = vadd.f32 %v1249, %v1436
        %v1438 = vpop.f32.mrf.mxu0
        %v1439 = vpop.f32.mrf.mxu0
        %v1440 = vadd.f32 %v1254, %v1439
        %v1441 = vpop.f32.mrf.mxu0
        %1442 = vmatprep.mubr.bf16.mxu0 %v1361
        %1443 = vmatmul.mubr.bf16.gmra.mxu0 %v1360
        %v1444 = vpop.f32.mrf.mxu0
        %v1445 = vadd.f32 %v1259, %v1444
        %v1446 = vpop.f32.mrf.mxu0
        %v1447 = vpop.f32.mrf.mxu0
        %v1448 = vadd.f32 %v1264, %v1447
        %v1449 = vpop.f32.mrf.mxu0
        %1450 = vmatprep.mubr.bf16.mxu0 %v1363
        %1451 = vmatmul.mubr.bf16.gmra.mxu0 %v1362
        %v1452 = vpop.f32.mrf.mxu0
        %v1453 = vadd.f32 %v1269, %v1452
        %v1454 = vpop.f32.mrf.mxu0
        %v1455 = vpop.f32.mrf.mxu0
        %v1456 = vadd.f32 %v1274, %v1455
        %v1457 = vpop.f32.mrf.mxu0
        %1458 = vmatprep.mubr.bf16.mxu0 %v1365
        %1459 = vmatmul.mubr.bf16.gmra.mxu0 %v1364
        %v1460 = vpop.f32.mrf.mxu0
        %v1461 = vadd.f32 %v1279, %v1460
        %v1462 = vpop.f32.mrf.mxu0
        %v1463 = vpop.f32.mrf.mxu0
        %v1464 = vadd.f32 %v1284, %v1463
        %v1465 = vpop.f32.mrf.mxu0
        %1466 = vmatprep.mubr.bf16.mxu0 %v1367
        %1467 = vmatmul.mubr.bf16.gmra.mxu0 %v1366
        %v1468 = vpop.f32.mrf.mxu0
        %v1469 = vadd.f32 %v1289, %v1468
        %v1470 = vpop.f32.mrf.mxu0
        %v1471 = vpop.f32.mrf.mxu0
        %v1472 = vadd.f32 %v1294, %v1471
        %v1473 = vpop.f32.mrf.mxu0
        %1474 = vmatprep.mubr.bf16.mxu0 %v1369
        %1475 = vmatmul.mubr.bf16.gmra.mxu0 %v1368
        %v1476 = vpop.f32.mrf.mxu0
        %v1477 = vadd.f32 %v1299, %v1476
        %v1478 = vpop.f32.mrf.mxu0
        %v1479 = vpop.f32.mrf.mxu0
        %v1480 = vadd.f32 %v1304, %v1479
        %v1481 = vpop.f32.mrf.mxu0
        %1482 = vdwg.mxu0
        %v1483 = vpack.c.bf16 %v1424, %v1421
        %v1484 = vpack.c.bf16 %v1432, %v1429
        %v1485 = vpack.c.bf16 %v1440, %v1437
        %v1486 = vpack.c.bf16 %v1448, %v1445
        %v1487 = vpack.c.bf16 %v1456, %v1453
        %v1488 = vpack.c.bf16 %v1464, %v1461
        %v1489 = vpack.c.bf16 %v1472, %v1469
        %v1490 = vpack.c.bf16 %v1480, %v1477
        %v1491 = vmax.bf16 %v1483, 0
        %v1492 = vmax.bf16 %v1484, 0
        %v1493 = vmax.bf16 %v1485, 0
        %v1494 = vmax.bf16 %v1486, 0
        %v1495 = vmax.bf16 %v1487, 0
        %v1496 = vmax.bf16 %v1488, 0
        %v1497 = vmax.bf16 %v1489, 0
        %v1498 = vmax.bf16 %v1490, 0
        %v1499 = vld [vmem:[%s7] sm:$0x1]
        %v1500 = vld [vmem:[#allocation2] sm:$0x1]
        %1502 = vset.pattern.permute.xlu0 0
        %1503 = vperm.xlu0 %1502, %v1500
        %v1504 = vpop.permute.xlu0 %1503
        %v1506 = vlaneseq
        %v1507 = vshrl.u32 %v1506, 7
        %v1508 = vsub.s32 0, %v1507
        %v1509 = vrot.slane %v1504, %v1508
        %1510 = vmatprep.subr.bf16.mxu0 0
        %1511 = vmatpush1.bf16.msra.mxu0 %v1498
        %1512 = vmatprep.subr.bf16.mxu0 0
        %1513 = vmatpush1.bf16.msra.mxu0 %v1497
        %1514 = vmatprep.subr.bf16.mxu0 0
        %1515 = vmatpush1.bf16.msra.mxu0 %v1496
        %1516 = vmatprep.subr.bf16.mxu0 0
        %1517 = vmatpush1.bf16.msra.mxu0 %v1495
        %1518 = vmatprep.subr.bf16.mxu0 0
        %1519 = vmatpush1.bf16.msra.mxu0 %v1494
        %1520 = vmatprep.subr.bf16.mxu0 0
        %1521 = vmatpush1.bf16.msra.mxu0 %v1493
        %1522 = vmatprep.subr.bf16.mxu0 0
        %1523 = vmatpush1.bf16.msra.mxu0 %v1492
        %1524 = vmatprep.subr.bf16.mxu0 0
        %1525 = vmatpush1.bf16.msra.mxu0 %v1491
        %1526 = vmatprep.subr.bf16.mxu0 0
        %1527 = vmatpush2.bf16.msra.mxu0 0
        %1528 = vmatprep.subr.bf16.mxu0 0
        %1529 = vmatpush2.bf16.msra.mxu0 0
        %1530 = vmatprep.subr.bf16.mxu0 0
        %1531 = vmatpush2.bf16.msra.mxu0 0
        %1532 = vmatprep.subr.bf16.mxu0 0
        %1533 = vmatpush2.bf16.msra.mxu0 0
        %1534 = vmatprep.subr.bf16.mxu0 0
        %1535 = vmatpush2.bf16.msra.mxu0 0
        %1536 = vmatprep.subr.bf16.mxu0 0
        %1537 = vmatpush2.bf16.msra.mxu0 0
        %1538 = vmatprep.subr.bf16.mxu0 0
        %1539 = vmatpush2.bf16.msra.mxu0 0
        %1540 = vmatprep.subr.bf16.mxu0 0
        %1541 = vmatpush2.bf16.msra.mxu0 0
        %1542 = vmatprep.mubr.bf16.mxu0 0
        %1543 = vmatmul.mubr.bf16.gmra.mxu0 %v1499
        %v1544 = vpop.f32.mrf.mxu0
        %v1545 = vadd.f32 %v1509, %v1544
        %v1546 = vpop.f32.mrf.mxu0
        %v1547 = vpop.f32.mrf.mxu0
        %v1548 = vpop.f32.mrf.mxu0
        %1549 = vdwg.mxu0
        %v1550 = vmax.f32 %v1545, 0.0
        %1551 = vst [vmem:[%s378] sm:$0x1] %v1550
        %s1552 = sand.u32 %s227, 1
        %s1553 = scalar_lea.sflag [#allocation5], %s1552
        %s1554 = sand.u32 %s227, 1
        %s1555 = scalar_lea.vmem [#allocation4], %s1554
        // Predicated region
        $region98: #{tpu_custom_call.1} parent=92 // pred_check
          %p1556 = pneg %p237
        $region99: #{tpu_custom_call.1} parent=92 // pred_check_branch
          %1558 = sbr.rel (%p1556) target = $region101
        $region100: #{tpu_custom_call.1} parent=92 // pred_region
          %s1560 = ssub.s32 16, 16
          %1561 = vsyncadd %s1553, %s1560
          %s1562 = smul.addr %s25, 16
          %s1563 = scalar_lea.hbm %s9, %s1562
          %s1565 = sshll.u32 %s1555, 4
          %s1566 = int_to_ptr.vmem [resolvable:$true] %s1565
          %1568 = dma.vmem_to_hbm [thread:$0]  %s1566, 16, %s1563, %s1553
        $region101: #{tpu_custom_call.1} parent=92 // pred_fallthru
          _
      $region93: #{tpu_custom_call.1} parent=5 // pred_fallthru
        _
      %p1569 = scmp.le.s32.totalorder 2, %s20
      // Predicated region
      $region102: #{tpu_custom_call.1} parent=5 // pred_check
        %p1570 = pneg %p1569
      $region103: #{tpu_custom_call.1} parent=5 // pred_check_branch
        %1572 = sbr.rel (%p1570) target = $region105
      $region104: #{tpu_custom_call.1} parent=5 // pred_region
        %s1573 = ssub.s32 %s20, 2
        // Predicated region
        $region106: #{tpu_custom_call.1} parent=104 // pred_check
          %p1574 = pneg %p243
        $region107: #{tpu_custom_call.1} parent=104 // pred_check_branch
          %1576 = sbr.rel (%p1574) target = $region109
        $region108: #{tpu_custom_call.1} parent=104 // pred_region
          %s1577 = sand.u32 %s228, 1
          %s1578 = scalar_lea.sflag [#allocation5], %s1577
          %s1579 = sand.u32 %s228, 1
          %s1580 = scalar_lea.vmem [#allocation4], %s1579
          %1581 = dma.done %s1578, 16
        $region109: #{tpu_custom_call.1} parent=104 // pred_fallthru
          _
      $region105: #{tpu_custom_call.1} parent=5 // pred_fallthru
        _
    $region6: #{tpu_custom_call.1} parent=1 // loop_footer
      %s24 = sadd.s32 1, %s20
    $region7: #{tpu_custom_call.1} parent=1 // loop_footer_branch
      %19 = sbr.rel target = $region3
    $region8: #{tpu_custom_call.1} parent=1 // loop_exit
      _
    %1582 = vsyncpa [#allocation5], 1
    %s1583 = scalar_lea.sflag [#allocation5], 1
    %1584 = vsyncpa %s1583, 1

</llo_original>
